<compile_context>
chip_gen: v7x
topology: tpu7x:2x2x1
jax: 0.10.0
libtpu: 0.0.40
codegen_flags: <defaults>
</compile_context>

<pallas_src>
import functools

import jax
import jax.numpy as jnp
from jax import lax
from jax.experimental import pallas as pl
from jax.experimental.pallas import tpu as pltpu

_BN_EPS = 1e-5
_L2_EPS = 1e-12                      # torch F.normalize default eps


def _round_up(x, m):
    return (x + m - 1) // m * m


def _cdiv(a, b):
    return (a + b - 1) // b


def _pad_to(a, shape):
    pads = [(0, t - s) for s, t in zip(a.shape, shape)]
    if all(p == (0, 0) for p in pads):
        return a
    return jnp.pad(a, pads)


def _vmem_limit_bytes():
    # Generation-aware VMEM budget: v5e/v6e have 128 MiB -> allow 64 MiB,
    # v7x has 64 MiB per TensorCore -> stay at a conservative 32 MiB.
    try:
        cap = pltpu.get_tpu_info().vmem_capacity_bytes
    except Exception:  # pragma: no cover - conservative fallback
        cap = 64 * 1024 * 1024
    return 64 * 1024 * 1024 if cap >= 96 * 1024 * 1024 else 32 * 1024 * 1024


def _pick_tile_n1(n, c, hw, itemsize, vmem_limit):
    # Largest power-of-two row tile (<=256) whose x block fits the per-buffer
    # DMA budget (~vmem_limit/8 -> 8 MiB on v5e/v6e, 4 MiB on v7x), sized on
    # the *padded* VMEM footprint of the tile (sublane->8, lane->128).
    budget = vmem_limit // 8
    row_bytes = _round_up(c, 8) * _round_up(hw, 128) * itemsize
    tile = 256
    while tile > 8 and tile * row_bytes > budget:
        tile //= 2
    return max(8, min(tile, _round_up(n, 8)))


def _pick_tile_n2(n):
    # K2 / emb row tile is decoupled from K1's x-DMA-driven tile: feat/emb
    # blocks are tiny, so go big to cut class-weight re-streams and fill MXU M.
    return min(512, _round_up(n, 8))


def _pick_tile_c(nc_pad, hid_pad, tile_n2, vmem_limit):
    # Largest lane-dense class tile dividing nc_pad that keeps K2's working
    # set (3x buffered bf16 weight tile + double-buffered f32 out tile + emb)
    # comfortably inside the VMEM budget.
    for t in (2048, 1024, 512, 256, 128):
        if nc_pad % t:
            continue
        vm = hid_pad * t * 2 * 3 + tile_n2 * t * 4 * 2 + tile_n2 * hid_pad * 2 * 2
        if vm <= vmem_limit // 2:
            return t
    return 128


def _w_stream_spec(block_shape, index_map, n_stream_steps):
    # Deeper buffering on the streamed class-weight tiles hides DMA latency
    # (mainly on v5e's lower HBM BW); only worth it when there is a real stream.
    if n_stream_steps > 2:
        try:
            return pl.BlockSpec(block_shape, index_map, pipeline_mode=pl.Buffered(3))
        except (TypeError, AttributeError):
            pass
    return pl.BlockSpec(block_shape, index_map)


# --------------------------------------------------------------------------
# Kernel 1: GAP + Linear + per-tile partial BN statistics (N axis parallel).
# --------------------------------------------------------------------------
def _make_feat_stats_kernel(n_rows, tile_n, inv_hw):
    def kernel(x_ref, w_ref, feat_ref, psum_ref, pssq_ref):
        # x_ref: (tile_n, C, HW) native dtype (NCHW slab, contiguous DMA);
        # GAP runs over the lane (HW) axis; upcast in-kernel.
        x = x_ref[...].astype(jnp.float32)
        gap = jnp.sum(x, axis=2) * inv_hw                        # (tile_n, C)
        feat = jnp.dot(gap, w_ref[...],
                       preferred_element_type=jnp.float32)       # (tile_n, hid_pad)
        feat_ref[...] = feat
        # Per-tile partial BN statistics; rows past the real batch (uneven
        # final block) are masked so they contribute nothing.
        row = pl.program_id(0) * tile_n + lax.broadcasted_iota(
            jnp.int32, (feat.shape[0], 1), 0)
        fm = jnp.where(row < n_rows, feat, 0.0)
        psum_ref[...] = jnp.sum(fm, axis=0, keepdims=True).reshape(psum_ref.shape)
        pssq_ref[...] = jnp.sum(fm * fm, axis=0, keepdims=True).reshape(pssq_ref.shape)

    return kernel


# --------------------------------------------------------------------------
# Kernel 1.5: BatchNorm (precomputed batch scale/shift) + L2 normalize -> bf16.
# --------------------------------------------------------------------------
def _emb_kernel(feat_ref, scale_ref, shift_ref, emb_ref):
    bn = feat_ref[...] * scale_ref[...] + shift_ref[...]         # (tile, hid_pad)
    sq = jnp.sum(bn * bn, axis=1, keepdims=True)
    inv = lax.rsqrt(jnp.maximum(sq, _L2_EPS * _L2_EPS))          # == x/max(||x||,eps)
    emb_ref[...] = (bn * inv).astype(jnp.bfloat16)


# --------------------------------------------------------------------------
# Kernel 2: pure streaming cosine-logits matmul (bf16 in, f32 accumulate).
# --------------------------------------------------------------------------
def _logits_kernel(emb_ref, w_ref, out_ref):
    out_ref[...] = jnp.dot(emb_ref[...], w_ref[...],
                           preferred_element_type=jnp.float32)


def prepare_margin_head_weights(w_linear, w_margin):
    """Pure weight transforms, hoisted out of the forward path (cacheable).

    w_linear: (hid_dim, C) torch Linear layout; w_margin: (num_classes, hid_dim).
    Returns (w_lin_t, w_nt): (C, hid_pad) f32 and (hid_pad, nc_pad) bf16
    (class weights L2-normalized and transposed).
    """
    hid, c = w_linear.shape
    num_classes = w_margin.shape[0]
    hid_pad = _round_up(hid, 128)
    nc_pad = _round_up(num_classes, 128)
    w_lin_t = _pad_to(jnp.transpose(w_linear.astype(jnp.float32)), (c, hid_pad))
    w_cls = w_margin.astype(jnp.float32)
    w_cls_n = w_cls * lax.rsqrt(
        jnp.maximum(jnp.sum(w_cls * w_cls, axis=1, keepdims=True),
                    _L2_EPS * _L2_EPS))
    w_nt = _pad_to(jnp.transpose(w_cls_n), (hid_pad, nc_pad)).astype(jnp.bfloat16)
    return w_lin_t, w_nt


@functools.partial(jax.jit, static_argnames=("num_classes",))
def margin_head_forward(x_nchw, w_lin_t, w_nt, *, num_classes):
    """x_nchw: (N, C, H, W) in its native dtype; weights from prepare_margin_head_weights."""
    n, c, h, w = x_nchw.shape
    hw = h * w
    hid_pad = w_lin_t.shape[1]
    nc_pad = w_nt.shape[1]

    vmem_limit = _vmem_limit_bytes()
    tile_n1 = _pick_tile_n1(n, c, hw, x_nchw.dtype.itemsize, vmem_limit)
    tile_n2 = _pick_tile_n2(n)
    tile_c = _pick_tile_c(nc_pad, hid_pad, tile_n2, vmem_limit)

    # Free reshape only -- no transpose / cast / pad of x along any axis.
    x = x_nchw.reshape(n, c, hw)

    # ---- K1: features + per-tile partial batch statistics ----
    grid1 = _cdiv(n, tile_n1)
    feat, psum, pssq = pl.pallas_call(
        _make_feat_stats_kernel(n, tile_n1, 1.0 / hw),
        out_shape=(
            jax.ShapeDtypeStruct((n, hid_pad), jnp.float32),
            jax.ShapeDtypeStruct((grid1, 1, hid_pad), jnp.float32),
            jax.ShapeDtypeStruct((grid1, 1, hid_pad), jnp.float32),
        ),
        grid_spec=pltpu.PrefetchScalarGridSpec(
            num_scalar_prefetch=0,
            grid=(grid1,),
            in_specs=[
                pl.BlockSpec((tile_n1, c, hw), lambda i: (i, 0, 0)),
                pl.BlockSpec((c, hid_pad), lambda i: (0, 0)),      # resident weight
            ],
            out_specs=[
                pl.BlockSpec((tile_n1, hid_pad), lambda i: (i, 0)),
                pl.BlockSpec((1, 1, hid_pad), lambda i: (i, 0, 0)),  # partial sum
                pl.BlockSpec((1, 1, hid_pad), lambda i: (i, 0, 0)),  # partial sumsq
            ],
        ),
        compiler_params=pltpu.CompilerParams(
            dimension_semantics=("parallel",),        # megacore-able on v7x
            vmem_limit_bytes=vmem_limit),
    )(x, w_lin_t)

    # Tiny O(grid1*hid) reduction of the partials + BN scale/shift (wrapper side).
    tot_sum = jnp.sum(psum, axis=0)                   # (1, hid_pad)
    tot_ssq = jnp.sum(pssq, axis=0)
    mu = tot_sum / n                                  # real batch size as divisor
    var = jnp.maximum(tot_ssq / n - mu * mu, 0.0)
    scale = lax.rsqrt(var + _BN_EPS)
    shift = -mu * scale

    # ---- K1.5: BN + L2-normalize once per row, emit bf16 embedding ----
    gride = _cdiv(n, tile_n2)
    emb = pl.pallas_call(
        _emb_kernel,
        out_shape=jax.ShapeDtypeStruct((n, hid_pad), jnp.bfloat16),
        grid_spec=pltpu.PrefetchScalarGridSpec(
            num_scalar_prefetch=0,
            grid=(gride,),
            in_specs=[
                pl.BlockSpec((tile_n2, hid_pad), lambda i: (i, 0)),
                pl.BlockSpec((1, hid_pad), lambda i: (0, 0)),
                pl.BlockSpec((1, hid_pad), lambda i: (0, 0)),
            ],
            out_specs=pl.BlockSpec((tile_n2, hid_pad), lambda i: (i, 0)),
        ),
        compiler_params=pltpu.CompilerParams(
            dimension_semantics=("parallel",),
            vmem_limit_bytes=vmem_limit),
    )(feat, scale, shift)

    # ---- K2: cosine logits (pure streaming bf16 matmul, both axes parallel) ----
    n_class_tiles = nc_pad // tile_c
    grid2 = (_cdiv(n, tile_n2), n_class_tiles)
    logits = pl.pallas_call(
        _logits_kernel,
        out_shape=jax.ShapeDtypeStruct((n, nc_pad), jnp.float32),
        grid_spec=pltpu.PrefetchScalarGridSpec(
            num_scalar_prefetch=0,
            grid=grid2,
            in_specs=[
                pl.BlockSpec((tile_n2, hid_pad), lambda i, j: (i, 0)),  # reused over j
                _w_stream_spec((hid_pad, tile_c), lambda i, j: (0, j),
                               n_class_tiles),                          # streamed
            ],
            out_specs=pl.BlockSpec((tile_n2, tile_c), lambda i, j: (i, j)),
        ),
        compiler_params=pltpu.CompilerParams(
            dimension_semantics=("parallel", "parallel"),
            vmem_limit_bytes=vmem_limit),
        cost_estimate=pl.CostEstimate(
            flops=2 * n * hid_pad * nc_pad,
            transcendentals=0,
            bytes_accessed=(n * hid_pad * 2 + hid_pad * nc_pad * 2
                            + n * nc_pad * 4)),
    )(emb, w_nt)

    return logits[:, :num_classes]


def _reference_forward(x_nchw, w_linear, w_margin):
    """Pure-JAX f32 reference mirroring the PyTorch module forward."""
    n, c, h, w = x_nchw.shape
    gap = jnp.mean(x_nchw.reshape(n, c, h * w).astype(jnp.float32), axis=-1)
    feat = gap @ w_linear.astype(jnp.float32).T
    mu = jnp.mean(feat, axis=0, keepdims=True)
    var = jnp.mean((feat - mu) ** 2, axis=0, keepdims=True)
    fbn = (feat - mu) / jnp.sqrt(var + _BN_EPS)
    emb = fbn / jnp.maximum(jnp.linalg.norm(fbn, axis=1, keepdims=True), _L2_EPS)
    wm = w_margin.astype(jnp.float32)
    wn = wm / jnp.maximum(jnp.linalg.norm(wm, axis=1, keepdims=True), _L2_EPS)
    return emb @ wn.T


if __name__ == "__main__":
    # Small shapes, deliberately misaligned to exercise padding/tiling:
    # C=96, HW=49 (full-extent blocks), hid=64 -> pad 128, 1000 classes -> pad 1024.
    N, C, H, W = 16, 96, 7, 7
    HID_DIM, NUM_CLASSES = 64, 1000

    key = jax.random.PRNGKey(0)
    k_x, k_lin, k_cls = jax.random.split(key, 3)

    x_last = jax.random.normal(k_x, (N, C, H, W), dtype=jnp.float32)
    x_list = [x_last]  # the module takes a feature-pyramid list; only x[-1] is used

    w_linear = 0.05 * jax.random.normal(k_lin, (HID_DIM, C), dtype=jnp.float32)
    w_margin = 0.01 * jax.random.normal(k_cls, (NUM_CLASSES, HID_DIM), dtype=jnp.float32)

    # Weight transforms are hoisted out of the forward path; cache across calls
    # whenever the parameters are static between steps.
    w_lin_t, w_nt = prepare_margin_head_weights(w_linear, w_margin)

    logits = margin_head_forward(x_list[-1], w_lin_t, w_nt, num_classes=NUM_CLASSES)
    jax.block_until_ready(logits)

    ref = _reference_forward(x_list[-1], w_linear, w_margin)

    assert logits.shape == (N, NUM_CLASSES)
    assert bool(jnp.all(jnp.isfinite(logits)))
    max_err = float(jnp.max(jnp.abs(logits - ref)))
    assert max_err < 2e-2, f"max abs error vs reference: {max_err}"

    print("KERNEL_OK")
</pallas_src>

<mosaic_0001>
module attributes {stable_mosaic.version = 11 : i64} {
  func.func @_emb_kernel(%arg0: i32, %arg1: memref<16x128xf32, #tpu.memory_space<vmem>>, %arg2: memref<1x128xf32, #tpu.memory_space<vmem>>, %arg3: memref<1x128xf32, #tpu.memory_space<vmem>>, %arg4: memref<16x128xbf16, #tpu.memory_space<vmem>>) attributes {dimension_semantics = [#tpu.dimension_semantics<parallel>], iteration_bounds = array<i64: 1>, scalar_prefetch = 0 : i64, scratch_operands = 0 : i64, tpu.core_type = #tpu.core_type<tc>, window_params = [{transform_indices = @transform_0, window_bounds = array<i64: 16, 128>}, {pipeline_mode = #tpu.pipeline_mode<synchronous>, transform_indices = @transform_1, window_bounds = array<i64: 1, 128>}, {pipeline_mode = #tpu.pipeline_mode<synchronous>, transform_indices = @transform_2, window_bounds = array<i64: 1, 128>}, {transform_indices = @transform_3, window_bounds = array<i64: 16, 128>}]} {
    %c0 = arith.constant 0 : index
    %c0_0 = arith.constant 0 : index
    %0 = vector.load %arg1[%c0, %c0_0] : memref<16x128xf32, #tpu.memory_space<vmem>>, vector<16x128xf32>
    %c0_1 = arith.constant 0 : index
    %c0_2 = arith.constant 0 : index
    %1 = vector.load %arg2[%c0_1, %c0_2] : memref<1x128xf32, #tpu.memory_space<vmem>>, vector<1x128xf32>
    %2 = vector.broadcast %1 : vector<1x128xf32> to vector<16x128xf32>
    %3 = arith.mulf %0, %2 : vector<16x128xf32>
    %c0_3 = arith.constant 0 : index
    %c0_4 = arith.constant 0 : index
    %4 = vector.load %arg3[%c0_3, %c0_4] : memref<1x128xf32, #tpu.memory_space<vmem>>, vector<1x128xf32>
    %5 = vector.broadcast %4 : vector<1x128xf32> to vector<16x128xf32>
    %6 = arith.addf %3, %5 : vector<16x128xf32>
    %7 = arith.mulf %6, %6 : vector<16x128xf32>
    %cst = arith.constant dense<0.000000e+00> : vector<16xf32>
    %8 = vector.multi_reduction <add>, %7, %cst [1] : vector<16x128xf32> to vector<16xf32>
    %9 = vector.shape_cast %8 : vector<16xf32> to vector<16x1xf32>
    %cst_5 = arith.constant 1.000000e-24 : f32
    %10 = vector.broadcast %cst_5 : f32 to vector<16x1xf32>
    %11 = arith.maximumf %9, %10 : vector<16x1xf32>
    %12 = math.rsqrt %11 : vector<16x1xf32>
    %13 = vector.broadcast %12 : vector<16x1xf32> to vector<16x128xf32>
    %14 = arith.mulf %6, %13 : vector<16x128xf32>
    %15 = arith.truncf %14 : vector<16x128xf32> to vector<16x128xbf16>
    %c0_6 = arith.constant 0 : index
    %c0_7 = arith.constant 0 : index
    %16 = vector.load %arg4[%c0_6, %c0_7] : memref<16x128xbf16, #tpu.memory_space<vmem>>, vector<16x128xbf16>
    tpu.vector_store %arg4[%c0_6, %c0_7], %15 {strides = array<i32>} : memref<16x128xbf16, #tpu.memory_space<vmem>>, vector<16x128xbf16>,
    return
  }
  func.func @transform_0(%arg0: i32) -> (i32, i32) {
    %c0_i32 = arith.constant 0 : i32
    %c0_i32_0 = arith.constant 0 : i32
    return %arg0, %c0_i32 : i32, i32
  }
  func.func @transform_1(%arg0: i32) -> (i32, i32) {
    %c0_i32 = arith.constant 0 : i32
    %c0_i32_0 = arith.constant 0 : i32
    %c0_i32_1 = arith.constant 0 : i32
    return %c0_i32, %c0_i32_0 : i32, i32
  }
  func.func @transform_2(%arg0: i32) -> (i32, i32) {
    %c0_i32 = arith.constant 0 : i32
    %c0_i32_0 = arith.constant 0 : i32
    %c0_i32_1 = arith.constant 0 : i32
    return %c0_i32, %c0_i32_0 : i32, i32
  }
  func.func @transform_3(%arg0: i32) -> (i32, i32) {
    %c0_i32 = arith.constant 0 : i32
    %c0_i32_0 = arith.constant 0 : i32
    return %arg0, %c0_i32 : i32, i32
  }
}

module attributes {stable_mosaic.version = 11 : i64} {
  func.func @kernel(%arg0: i32, %arg1: memref<16x96x49xf32, #tpu.memory_space<vmem>>, %arg2: memref<96x128xf32, #tpu.memory_space<vmem>>, %arg3: memref<16x128xf32, #tpu.memory_space<vmem>>, %arg4: memref<1x1x128xf32, #tpu.memory_space<vmem>>, %arg5: memref<1x1x128xf32, #tpu.memory_space<vmem>>) attributes {dimension_semantics = [#tpu.dimension_semantics<parallel>], iteration_bounds = array<i64: 1>, scalar_prefetch = 0 : i64, scratch_operands = 0 : i64, tpu.core_type = #tpu.core_type<tc>, window_params = [{transform_indices = @transform_0, window_bounds = array<i64: 16, 96, 49>}, {pipeline_mode = #tpu.pipeline_mode<synchronous>, transform_indices = @transform_1, window_bounds = array<i64: 96, 128>}, {transform_indices = @transform_2, window_bounds = array<i64: 16, 128>}, {transform_indices = @transform_3, window_bounds = array<i64: 1, 1, 128>}, {transform_indices = @transform_4, window_bounds = array<i64: 1, 1, 128>}]} {
    %c0 = arith.constant 0 : index
    %c0_0 = arith.constant 0 : index
    %c0_1 = arith.constant 0 : index
    %0 = vector.load %arg1[%c0, %c0_0, %c0_1] : memref<16x96x49xf32, #tpu.memory_space<vmem>>, vector<16x96x49xf32>
    %cst = arith.constant dense<0.000000e+00> : vector<16x96xf32>
    %1 = vector.multi_reduction <add>, %0, %cst [2] : vector<16x96x49xf32> to vector<16x96xf32>
    %cst_2 = arith.constant 0.0204081628 : f32
    %2 = vector.broadcast %cst_2 : f32 to vector<16x96xf32>
    %3 = arith.mulf %1, %2 : vector<16x96xf32>
    %c0_3 = arith.constant 0 : index
    %c0_4 = arith.constant 0 : index
    %4 = vector.load %arg2[%c0_3, %c0_4] : memref<96x128xf32, #tpu.memory_space<vmem>>, vector<96x128xf32>
    %cst_5 = arith.constant dense<0.000000e+00> : vector<16x128xf32>
    %5 = tpu.matmul %3, %4, %cst_5 {dimension_numbers = #tpu.dot_dimension_numbers<[1], [0], [0], [1], [0, 0, 1, 1], [], []>} : vector<16x96xf32>, vector<96x128xf32>, vector<16x128xf32> -> vector<16x128xf32>
    %c0_6 = arith.constant 0 : index
    %c0_7 = arith.constant 0 : index
    %6 = vector.load %arg3[%c0_6, %c0_7] : memref<16x128xf32, #tpu.memory_space<vmem>>, vector<16x128xf32>
    tpu.vector_store %arg3[%c0_6, %c0_7], %5 {strides = array<i32>} : memref<16x128xf32, #tpu.memory_space<vmem>>, vector<16x128xf32>,
    %c16_i32 = arith.constant 16 : i32
    %7 = arith.muli %arg0, %c16_i32 : i32
    %8 = tpu.iota {dimensions = array<i32: 0>} : vector<16x1xi32>
    %9 = vector.broadcast %7 : i32 to vector<16x1xi32>
    %10 = arith.addi %9, %8 : vector<16x1xi32>
    %c16_i32_8 = arith.constant 16 : i32
    %11 = vector.broadcast %c16_i32_8 : i32 to vector<16x1xi32>
    %12 = arith.cmpi slt, %10, %11 : vector<16x1xi32>
    %cst_9 = arith.constant 0.000000e+00 : f32
    %13 = vector.shape_cast %12 : vector<16x1xi1> to vector<16x1xi1>
    %14 = vector.broadcast %13 : vector<16x1xi1> to vector<16x128xi1>
    %15 = vector.broadcast %cst_9 : f32 to vector<16x128xf32>
    %16 = arith.select %14, %5, %15 : vector<16x128xi1>, vector<16x128xf32>
    %cst_10 = arith.constant dense<0.000000e+00> : vector<128xf32>
    %17 = vector.multi_reduction <add>, %16, %cst_10 [0] : vector<16x128xf32> to vector<128xf32>
    %18 = vector.shape_cast %17 : vector<128xf32> to vector<1x128xf32>
    %19 = vector.shape_cast %18 : vector<1x128xf32> to vector<1x1x128xf32>
    %c0_11 = arith.constant 0 : index
    %c0_12 = arith.constant 0 : index
    %c0_13 = arith.constant 0 : index
    %20 = vector.load %arg4[%c0_11, %c0_12, %c0_13] : memref<1x1x128xf32, #tpu.memory_space<vmem>>, vector<1x1x128xf32>
    tpu.vector_store %arg4[%c0_11, %c0_12, %c0_13], %19 {strides = array<i32>} : memref<1x1x128xf32, #tpu.memory_space<vmem>>, vector<1x1x128xf32>,
    %21 = arith.mulf %16, %16 : vector<16x128xf32>
    %cst_14 = arith.constant dense<0.000000e+00> : vector<128xf32>
    %22 = vector.multi_reduction <add>, %21, %cst_14 [0] : vector<16x128xf32> to vector<128xf32>
    %23 = vector.shape_cast %22 : vector<128xf32> to vector<1x128xf32>
    %24 = vector.shape_cast %23 : vector<1x128xf32> to vector<1x1x128xf32>
    %c0_15 = arith.constant 0 : index
    %c0_16 = arith.constant 0 : index
    %c0_17 = arith.constant 0 : index
    %25 = vector.load %arg5[%c0_15, %c0_16, %c0_17] : memref<1x1x128xf32, #tpu.memory_space<vmem>>, vector<1x1x128xf32>
    tpu.vector_store %arg5[%c0_15, %c0_16, %c0_17], %24 {strides = array<i32>} : memref<1x1x128xf32, #tpu.memory_space<vmem>>, vector<1x1x128xf32>,
    return
  }
  func.func @transform_0(%arg0: i32) -> (i32, i32, i32) {
    %c0_i32 = arith.constant 0 : i32
    %c0_i32_0 = arith.constant 0 : i32
    %c0_i32_1 = arith.constant 0 : i32
    return %arg0, %c0_i32, %c0_i32_0 : i32, i32, i32
  }
  func.func @transform_1(%arg0: i32) -> (i32, i32) {
    %c0_i32 = arith.constant 0 : i32
    %c0_i32_0 = arith.constant 0 : i32
    %c0_i32_1 = arith.constant 0 : i32
    return %c0_i32, %c0_i32_0 : i32, i32
  }
  func.func @transform_2(%arg0: i32) -> (i32, i32) {
    %c0_i32 = arith.constant 0 : i32
    %c0_i32_0 = arith.constant 0 : i32
    return %arg0, %c0_i32 : i32, i32
  }
  func.func @transform_3(%arg0: i32) -> (i32, i32, i32) {
    %c0_i32 = arith.constant 0 : i32
    %c0_i32_0 = arith.constant 0 : i32
    %c0_i32_1 = arith.constant 0 : i32
    return %arg0, %c0_i32, %c0_i32_0 : i32, i32, i32
  }
  func.func @transform_4(%arg0: i32) -> (i32, i32, i32) {
    %c0_i32 = arith.constant 0 : i32
    %c0_i32_0 = arith.constant 0 : i32
    %c0_i32_1 = arith.constant 0 : i32
    return %arg0, %c0_i32, %c0_i32_0 : i32, i32, i32
  }
}

module attributes {stable_mosaic.version = 11 : i64} {
  func.func @_logits_kernel(%arg0: i32, %arg1: i32, %arg2: memref<16x128xbf16, #tpu.memory_space<vmem>>, %arg3: memref<128x1024xbf16, #tpu.memory_space<vmem>>, %arg4: memref<16x1024xf32, #tpu.memory_space<vmem>>) attributes {dimension_semantics = [#tpu.dimension_semantics<parallel>, #tpu.dimension_semantics<parallel>], iteration_bounds = array<i64: 1, 1>, scalar_prefetch = 0 : i64, scratch_operands = 0 : i64, tpu.core_type = #tpu.core_type<tc>, window_params = [{transform_indices = @transform_0, window_bounds = array<i64: 16, 128>}, {transform_indices = @transform_1, window_bounds = array<i64: 128, 1024>}, {transform_indices = @transform_2, window_bounds = array<i64: 16, 1024>}]} {
    %c0 = arith.constant 0 : index
    %c0_0 = arith.constant 0 : index
    %0 = vector.load %arg2[%c0, %c0_0] : memref<16x128xbf16, #tpu.memory_space<vmem>>, vector<16x128xbf16>
    %c0_1 = arith.constant 0 : index
    %c0_2 = arith.constant 0 : index
    %1 = vector.load %arg3[%c0_1, %c0_2] : memref<128x1024xbf16, #tpu.memory_space<vmem>>, vector<128x1024xbf16>
    %cst = arith.constant dense<0.000000e+00> : vector<16x1024xf32>
    %2 = tpu.matmul %0, %1, %cst {dimension_numbers = #tpu.dot_dimension_numbers<[1], [0], [0], [1], [0, 0, 1, 1], [], []>} : vector<16x128xbf16>, vector<128x1024xbf16>, vector<16x1024xf32> -> vector<16x1024xf32>
    %c0_3 = arith.constant 0 : index
    %c0_4 = arith.constant 0 : index
    %3 = vector.load %arg4[%c0_3, %c0_4] : memref<16x1024xf32, #tpu.memory_space<vmem>>, vector<16x1024xf32>
    tpu.vector_store %arg4[%c0_3, %c0_4], %2 {strides = array<i32>} : memref<16x1024xf32, #tpu.memory_space<vmem>>, vector<16x1024xf32>,
    return
  }
  func.func @transform_0(%arg0: i32, %arg1: i32) -> (i32, i32) {
    %c0_i32 = arith.constant 0 : i32
    %c0_i32_0 = arith.constant 0 : i32
    return %arg0, %c0_i32 : i32, i32
  }
  func.func @transform_1(%arg0: i32, %arg1: i32) -> (i32, i32) {
    %c0_i32 = arith.constant 0 : i32
    %c0_i32_0 = arith.constant 0 : i32
    return %c0_i32, %arg1 : i32, i32
  }
  func.func @transform_2(%arg0: i32, %arg1: i32) -> (i32, i32) {
    %c0_i32 = arith.constant 0 : i32
    return %arg0, %arg1 : i32, i32
  }
}

</mosaic_0001>

<llo_original>
// kernel: margin_head_forward.4
$region0: #{margin_head_forward.4}
  #allocation0 [shape = 'u32[]', space=smem, size = 0x4, offset = 0x4, fixed_abs, tag = 'smem constant byte address 0x4 - core index']
  #allocation1 [shape = 'u32[144,128]{1,0:T(1,128)}', space=vmem, size = 0x12000, scoped, tag = 'internal scratch']
  %s0 = inlined_call_operand.vmem [shape: f32[16,128], index: 0, kind: input, shape index: {}]
  %s1 = inlined_call_operand.vmem [shape: f32[1,128], index: 1, kind: input, shape index: {}]
  %s2 = inlined_call_operand.vmem [shape: f32[1,128], index: 2, kind: input, shape index: {}]
  %s3 = inlined_call_operand.vmem [shape: bf16[16,128], index: 3, kind: output, shape index: {}]
  %s4 = sld [smem:[#allocation0]]
  $region22: #{margin_head_forward.4} parent=0
    _
  %s6 = ssub.s32 1, %s4
  %s7 = scalar_select 0, %s6, %s4
  // Predicated region
  $region2: #{margin_head_forward.4} parent=0 // pred_check
    _
  $region3: #{margin_head_forward.4} parent=0 // pred_check_branch
    %9 = sbr.rel (0) target = $region5
  $region4: #{margin_head_forward.4} parent=0 // pred_region
    _
  $region5: #{margin_head_forward.4} parent=0 // pred_fallthru
    _
  // Predicated region
  $region6: #{margin_head_forward.4} parent=0 // pred_check
    _
  $region7: #{margin_head_forward.4} parent=0 // pred_check_branch
    %11 = sbr.rel (0) target = $region9
  $region8: #{margin_head_forward.4} parent=0 // pred_region
    _
  $region9: #{margin_head_forward.4} parent=0 // pred_fallthru
    _
  // Predicated region
  $region10: #{margin_head_forward.4} parent=0 // pred_check
    _
  $region11: #{margin_head_forward.4} parent=0 // pred_check_branch
    %13 = sbr.rel (0) target = $region13
  $region12: #{margin_head_forward.4} parent=0 // pred_region
    _
  $region13: #{margin_head_forward.4} parent=0 // pred_fallthru
    _
  %v14 = vld [vmem:[%s0] sm:$0xff]
  %v15 = vld [vmem:[%s0 + $0x8] sm:$0xff]
  %v16 = vld [vmem:[%s1] sm:$0x1]
  %v18 = vlaneseq
  %v19 = vshrl.u32 %v18, 7
  %v20 = vsub.s32 0, %v19
  %v21 = vrot.slane %v16, %v20
  %v23 = vmul.f32 %v14, %v21
  %v24 = vmul.f32 %v15, %v21
  %v25 = vld [vmem:[%s2] sm:$0x1]
  %v27 = vlaneseq
  %v28 = vshrl.u32 %v27, 7
  %v29 = vsub.s32 0, %v28
  %v30 = vrot.slane %v25, %v29
  %v32 = vadd.f32 %v23, %v30
  %v33 = vadd.f32 %v24, %v30
  %v34 = vmul.f32 %v32, %v32
  %v35 = vmul.f32 %v33, %v33
  %36 = vadd.xlane.f32.xlu0 %v34
  %v37 = vpop.xlane.xlu0 %36
  %38 = vadd.xlane.f32.xlu0 %v35
  %v39 = vpop.xlane.xlu0 %38
  %v40 = vmax.f32 %v37, 1e-24
  %v41 = vmax.f32 %v39, 1e-24
  %v42 = vrsqrt.pop %v40
  %v43 = vrsqrt.pop %v41
  %v44 = vmul.f32 %v32, %v42
  %v45 = vmul.f32 %v33, %v43
  %v46 = vpack.c.bf16 %v45, %v44
  %v48 = vunpack.c.l.b16 %v46
  %v49 = vunpack.c.h.b16 %v46
  %v50 = vpack.c.b16 %v48, %v48
  %v51 = vpack.c.b16 %v49, %v49
  %54 = vst [vmem:[%s3] sm:$0xf] %v50
  %55 = vst [vmem:[%s3 + $0x4] sm:$0xf] %v51
  // Predicated region
  $region14: #{margin_head_forward.4} parent=0 // pred_check
    _
  $region15: #{margin_head_forward.4} parent=0 // pred_check_branch
    %57 = sbr.rel (0) target = $region17
  $region16: #{margin_head_forward.4} parent=0 // pred_region
    _
  $region17: #{margin_head_forward.4} parent=0 // pred_fallthru
    _
  // Predicated region
  $region18: #{margin_head_forward.4} parent=0 // pred_check
    _
  $region19: #{margin_head_forward.4} parent=0 // pred_check_branch
    %59 = sbr.rel (0) target = $region21
  $region20: #{margin_head_forward.4} parent=0 // pred_region
    _
  $region21: #{margin_head_forward.4} parent=0 // pred_fallthru
    _

// kernel: margin_head_forward.5
$region0: #{margin_head_forward.5}
  #allocation0 [shape = 'u32[]', space=smem, size = 0x4, offset = 0x4, fixed_abs, tag = 'smem constant byte address 0x4 - core index']
  #allocation1 [shape = 'u32[144,128]{1,0:T(1,128)}', space=vmem, size = 0x12000, scoped, tag = 'internal scratch']
  %s0 = inlined_call_operand.vmem [shape: bf16[16,128], index: 0, kind: input, shape index: {}]
  %s1 = inlined_call_operand.vmem [shape: bf16[128,1024], index: 1, kind: input, shape index: {}]
  %s2 = inlined_call_operand.hbm [shape: f32[16,1024], index: 2, kind: output, shape index: {}]
  %s3 = sld [smem:[#allocation0]]
  $region18: #{margin_head_forward.5} parent=0
    _
  %s5 = ssub.s32 1, %s3
  %s6 = scalar_select 0, %s5, %s3
  $region1: #{margin_head_forward.5} parent=0
    #allocation2 [shape = 'u8[65536]{0}', space=vmem, size = 0x10000, scoped, tag = 'output window, operand 0, single buffered']
    #allocation3 [shape = 's32[1]{0}', space=sflag, size = 0x4, scoped, tag = 'scoped memory for margin_head_forward.5']
    %7 = vsyncpa [#allocation3], 0
    // Predicated region
    $region2: #{margin_head_forward.5} parent=1 // pred_check
      _
    $region3: #{margin_head_forward.5} parent=1 // pred_check_branch
      %9 = sbr.rel (0) target = $region5
    $region4: #{margin_head_forward.5} parent=1 // pred_region
      _
    $region5: #{margin_head_forward.5} parent=1 // pred_fallthru
      _
    // Predicated region
    $region6: #{margin_head_forward.5} parent=1 // pred_check
      _
    $region7: #{margin_head_forward.5} parent=1 // pred_check_branch
      %11 = sbr.rel (0) target = $region9
    $region8: #{margin_head_forward.5} parent=1 // pred_region
      _
    $region9: #{margin_head_forward.5} parent=1 // pred_fallthru
      _
    %v13 = vld [vmem:[%s0] sm:$0xf]
    %v14 = vld [vmem:[%s0 + $0x4] sm:$0xf]
    %v15 = vld [vmem:[%s1] sm:$0xff]
    %v16 = vld [vmem:[%s1 + $0x8] sm:$0xff]
    %v17 = vld [vmem:[%s1 + $0x10] sm:$0xff]
    %v18 = vld [vmem:[%s1 + $0x18] sm:$0xff]
    %v19 = vld [vmem:[%s1 + $0x20] sm:$0xff]
    %v20 = vld [vmem:[%s1 + $0x28] sm:$0xff]
    %v21 = vld [vmem:[%s1 + $0x30] sm:$0xff]
    %v22 = vld [vmem:[%s1 + $0x38] sm:$0xff]
    %v23 = vld [vmem:[%s1 + $0x40] sm:$0xff]
    %v24 = vld [vmem:[%s1 + $0x48] sm:$0xff]
    %v25 = vld [vmem:[%s1 + $0x50] sm:$0xff]
    %v26 = vld [vmem:[%s1 + $0x58] sm:$0xff]
    %v27 = vld [vmem:[%s1 + $0x60] sm:$0xff]
    %v28 = vld [vmem:[%s1 + $0x68] sm:$0xff]
    %v29 = vld [vmem:[%s1 + $0x70] sm:$0xff]
    %v30 = vld [vmem:[%s1 + $0x78] sm:$0xff]
    %v31 = vld [vmem:[%s1 + $0x80] sm:$0xff]
    %v32 = vld [vmem:[%s1 + $0x88] sm:$0xff]
    %v33 = vld [vmem:[%s1 + $0x90] sm:$0xff]
    %v34 = vld [vmem:[%s1 + $0x98] sm:$0xff]
    %v35 = vld [vmem:[%s1 + $0xa0] sm:$0xff]
    %v36 = vld [vmem:[%s1 + $0xa8] sm:$0xff]
    %v37 = vld [vmem:[%s1 + $0xb0] sm:$0xff]
    %v38 = vld [vmem:[%s1 + $0xb8] sm:$0xff]
    %v39 = vld [vmem:[%s1 + $0xc0] sm:$0xff]
    %v40 = vld [vmem:[%s1 + $0xc8] sm:$0xff]
    %v41 = vld [vmem:[%s1 + $0xd0] sm:$0xff]
    %v42 = vld [vmem:[%s1 + $0xd8] sm:$0xff]
    %v43 = vld [vmem:[%s1 + $0xe0] sm:$0xff]
    %v44 = vld [vmem:[%s1 + $0xe8] sm:$0xff]
    %v45 = vld [vmem:[%s1 + $0xf0] sm:$0xff]
    %v46 = vld [vmem:[%s1 + $0xf8] sm:$0xff]
    %v47 = vld [vmem:[%s1 + $0x100] sm:$0xff]
    %v48 = vld [vmem:[%s1 + $0x108] sm:$0xff]
    %v49 = vld [vmem:[%s1 + $0x110] sm:$0xff]
    %v50 = vld [vmem:[%s1 + $0x118] sm:$0xff]
    %v51 = vld [vmem:[%s1 + $0x120] sm:$0xff]
    %v52 = vld [vmem:[%s1 + $0x128] sm:$0xff]
    %v53 = vld [vmem:[%s1 + $0x130] sm:$0xff]
    %v54 = vld [vmem:[%s1 + $0x138] sm:$0xff]
    %v55 = vld [vmem:[%s1 + $0x140] sm:$0xff]
    %v56 = vld [vmem:[%s1 + $0x148] sm:$0xff]
    %v57 = vld [vmem:[%s1 + $0x150] sm:$0xff]
    %v58 = vld [vmem:[%s1 + $0x158] sm:$0xff]
    %v59 = vld [vmem:[%s1 + $0x160] sm:$0xff]
    %v60 = vld [vmem:[%s1 + $0x168] sm:$0xff]
    %v61 = vld [vmem:[%s1 + $0x170] sm:$0xff]
    %v62 = vld [vmem:[%s1 + $0x178] sm:$0xff]
    %v63 = vld [vmem:[%s1 + $0x180] sm:$0xff]
    %v64 = vld [vmem:[%s1 + $0x188] sm:$0xff]
    %v65 = vld [vmem:[%s1 + $0x190] sm:$0xff]
    %v66 = vld [vmem:[%s1 + $0x198] sm:$0xff]
    %v67 = vld [vmem:[%s1 + $0x1a0] sm:$0xff]
    %v68 = vld [vmem:[%s1 + $0x1a8] sm:$0xff]
    %v69 = vld [vmem:[%s1 + $0x1b0] sm:$0xff]
    %v70 = vld [vmem:[%s1 + $0x1b8] sm:$0xff]
    %v71 = vld [vmem:[%s1 + $0x1c0] sm:$0xff]
    %v72 = vld [vmem:[%s1 + $0x1c8] sm:$0xff]
    %v73 = vld [vmem:[%s1 + $0x1d0] sm:$0xff]
    %v74 = vld [vmem:[%s1 + $0x1d8] sm:$0xff]
    %v75 = vld [vmem:[%s1 + $0x1e0] sm:$0xff]
    %v76 = vld [vmem:[%s1 + $0x1e8] sm:$0xff]
    %v77 = vld [vmem:[%s1 + $0x1f0] sm:$0xff]
    %v78 = vld [vmem:[%s1 + $0x1f8] sm:$0xff]
    %v81 = vunpack.c.l.b16 %v13
    %v82 = vunpack.c.l.b16 %v14
    %v83 = vpack.c.b16 %v82, %v81
    %v149 = vunpack.c.l.b16 %v15
    %v150 = vunpack.c.h.b16 %v15
    %v151 = vunpack.c.l.b16 %v16
    %v152 = vunpack.c.h.b16 %v16
    %v153 = vunpack.c.l.b16 %v17
    %v154 = vunpack.c.h.b16 %v17
    %v155 = vunpack.c.l.b16 %v18
    %v156 = vunpack.c.h.b16 %v18
    %v157 = vunpack.c.l.b16 %v19
    %v158 = vunpack.c.h.b16 %v19
    %v159 = vunpack.c.l.b16 %v20
    %v160 = vunpack.c.h.b16 %v20
    %v161 = vunpack.c.l.b16 %v21
    %v162 = vunpack.c.h.b16 %v21
    %v163 = vunpack.c.l.b16 %v22
    %v164 = vunpack.c.h.b16 %v22
    %v165 = vunpack.c.l.b16 %v23
    %v166 = vunpack.c.h.b16 %v23
    %v167 = vunpack.c.l.b16 %v24
    %v168 = vunpack.c.h.b16 %v24
    %v169 = vunpack.c.l.b16 %v25
    %v170 = vunpack.c.h.b16 %v25
    %v171 = vunpack.c.l.b16 %v26
    %v172 = vunpack.c.h.b16 %v26
    %v173 = vunpack.c.l.b16 %v27
    %v174 = vunpack.c.h.b16 %v27
    %v175 = vunpack.c.l.b16 %v28
    %v176 = vunpack.c.h.b16 %v28
    %v177 = vunpack.c.l.b16 %v29
    %v178 = vunpack.c.h.b16 %v29
    %v179 = vunpack.c.l.b16 %v30
    %v180 = vunpack.c.h.b16 %v30
    %v181 = vunpack.c.l.b16 %v31
    %v182 = vunpack.c.h.b16 %v31
    %v183 = vunpack.c.l.b16 %v32
    %v184 = vunpack.c.h.b16 %v32
    %v185 = vunpack.c.l.b16 %v33
    %v186 = vunpack.c.h.b16 %v33
    %v187 = vunpack.c.l.b16 %v34
    %v188 = vunpack.c.h.b16 %v34
    %v189 = vunpack.c.l.b16 %v35
    %v190 = vunpack.c.h.b16 %v35
    %v191 = vunpack.c.l.b16 %v36
    %v192 = vunpack.c.h.b16 %v36
    %v193 = vunpack.c.l.b16 %v37
    %v194 = vunpack.c.h.b16 %v37
    %v195 = vunpack.c.l.b16 %v38
    %v196 = vunpack.c.h.b16 %v38
    %v197 = vunpack.c.l.b16 %v39
    %v198 = vunpack.c.h.b16 %v39
    %v199 = vunpack.c.l.b16 %v40
    %v200 = vunpack.c.h.b16 %v40
    %v201 = vunpack.c.l.b16 %v41
    %v202 = vunpack.c.h.b16 %v41
    %v203 = vunpack.c.l.b16 %v42
    %v204 = vunpack.c.h.b16 %v42
    %v205 = vunpack.c.l.b16 %v43
    %v206 = vunpack.c.h.b16 %v43
    %v207 = vunpack.c.l.b16 %v44
    %v208 = vunpack.c.h.b16 %v44
    %v209 = vunpack.c.l.b16 %v45
    %v210 = vunpack.c.h.b16 %v45
    %v211 = vunpack.c.l.b16 %v46
    %v212 = vunpack.c.h.b16 %v46
    %v213 = vunpack.c.l.b16 %v47
    %v214 = vunpack.c.h.b16 %v47
    %v215 = vunpack.c.l.b16 %v48
    %v216 = vunpack.c.h.b16 %v48
    %v217 = vunpack.c.l.b16 %v49
    %v218 = vunpack.c.h.b16 %v49
    %v219 = vunpack.c.l.b16 %v50
    %v220 = vunpack.c.h.b16 %v50
    %v221 = vunpack.c.l.b16 %v51
    %v222 = vunpack.c.h.b16 %v51
    %v223 = vunpack.c.l.b16 %v52
    %v224 = vunpack.c.h.b16 %v52
    %v225 = vunpack.c.l.b16 %v53
    %v226 = vunpack.c.h.b16 %v53
    %v227 = vunpack.c.l.b16 %v54
    %v228 = vunpack.c.h.b16 %v54
    %v229 = vunpack.c.l.b16 %v55
    %v230 = vunpack.c.h.b16 %v55
    %v231 = vunpack.c.l.b16 %v56
    %v232 = vunpack.c.h.b16 %v56
    %v233 = vunpack.c.l.b16 %v57
    %v234 = vunpack.c.h.b16 %v57
    %v235 = vunpack.c.l.b16 %v58
    %v236 = vunpack.c.h.b16 %v58
    %v237 = vunpack.c.l.b16 %v59
    %v238 = vunpack.c.h.b16 %v59
    %v239 = vunpack.c.l.b16 %v60
    %v240 = vunpack.c.h.b16 %v60
    %v241 = vunpack.c.l.b16 %v61
    %v242 = vunpack.c.h.b16 %v61
    %v243 = vunpack.c.l.b16 %v62
    %v244 = vunpack.c.h.b16 %v62
    %v245 = vunpack.c.l.b16 %v63
    %v246 = vunpack.c.h.b16 %v63
    %v247 = vunpack.c.l.b16 %v64
    %v248 = vunpack.c.h.b16 %v64
    %v249 = vunpack.c.l.b16 %v65
    %v250 = vunpack.c.h.b16 %v65
    %v251 = vunpack.c.l.b16 %v66
    %v252 = vunpack.c.h.b16 %v66
    %v253 = vunpack.c.l.b16 %v67
    %v254 = vunpack.c.h.b16 %v67
    %v255 = vunpack.c.l.b16 %v68
    %v256 = vunpack.c.h.b16 %v68
    %v257 = vunpack.c.l.b16 %v69
    %v258 = vunpack.c.h.b16 %v69
    %v259 = vunpack.c.l.b16 %v70
    %v260 = vunpack.c.h.b16 %v70
    %v261 = vunpack.c.l.b16 %v71
    %v262 = vunpack.c.h.b16 %v71
    %v263 = vunpack.c.l.b16 %v72
    %v264 = vunpack.c.h.b16 %v72
    %v265 = vunpack.c.l.b16 %v73
    %v266 = vunpack.c.h.b16 %v73
    %v267 = vunpack.c.l.b16 %v74
    %v268 = vunpack.c.h.b16 %v74
    %v269 = vunpack.c.l.b16 %v75
    %v270 = vunpack.c.h.b16 %v75
    %v271 = vunpack.c.l.b16 %v76
    %v272 = vunpack.c.h.b16 %v76
    %v273 = vunpack.c.l.b16 %v77
    %v274 = vunpack.c.h.b16 %v77
    %v275 = vunpack.c.l.b16 %v78
    %v276 = vunpack.c.h.b16 %v78
    %v277 = vpack.c.b16 %v157, %v149
    %v278 = vpack.c.b16 %v158, %v150
    %v279 = vpack.c.b16 %v159, %v151
    %v280 = vpack.c.b16 %v160, %v152
    %v281 = vpack.c.b16 %v161, %v153
    %v282 = vpack.c.b16 %v162, %v154
    %v283 = vpack.c.b16 %v163, %v155
    %v284 = vpack.c.b16 %v164, %v156
    %v285 = vpack.c.b16 %v173, %v165
    %v286 = vpack.c.b16 %v174, %v166
    %v287 = vpack.c.b16 %v175, %v167
    %v288 = vpack.c.b16 %v176, %v168
    %v289 = vpack.c.b16 %v177, %v169
    %v290 = vpack.c.b16 %v178, %v170
    %v291 = vpack.c.b16 %v179, %v171
    %v292 = vpack.c.b16 %v180, %v172
    %v293 = vpack.c.b16 %v189, %v181
    %v294 = vpack.c.b16 %v190, %v182
    %v295 = vpack.c.b16 %v191, %v183
    %v296 = vpack.c.b16 %v192, %v184
    %v297 = vpack.c.b16 %v193, %v185
    %v298 = vpack.c.b16 %v194, %v186
    %v299 = vpack.c.b16 %v195, %v187
    %v300 = vpack.c.b16 %v196, %v188
    %v301 = vpack.c.b16 %v205, %v197
    %v302 = vpack.c.b16 %v206, %v198
    %v303 = vpack.c.b16 %v207, %v199
    %v304 = vpack.c.b16 %v208, %v200
    %v305 = vpack.c.b16 %v209, %v201
    %v306 = vpack.c.b16 %v210, %v202
    %v307 = vpack.c.b16 %v211, %v203
    %v308 = vpack.c.b16 %v212, %v204
    %v309 = vpack.c.b16 %v221, %v213
    %v310 = vpack.c.b16 %v222, %v214
    %v311 = vpack.c.b16 %v223, %v215
    %v312 = vpack.c.b16 %v224, %v216
    %v313 = vpack.c.b16 %v225, %v217
    %v314 = vpack.c.b16 %v226, %v218
    %v315 = vpack.c.b16 %v227, %v219
    %v316 = vpack.c.b16 %v228, %v220
    %v317 = vpack.c.b16 %v237, %v229
    %v318 = vpack.c.b16 %v238, %v230
    %v319 = vpack.c.b16 %v239, %v231
    %v320 = vpack.c.b16 %v240, %v232
    %v321 = vpack.c.b16 %v241, %v233
    %v322 = vpack.c.b16 %v242, %v234
    %v323 = vpack.c.b16 %v243, %v235
    %v324 = vpack.c.b16 %v244, %v236
    %v325 = vpack.c.b16 %v253, %v245
    %v326 = vpack.c.b16 %v254, %v246
    %v327 = vpack.c.b16 %v255, %v247
    %v328 = vpack.c.b16 %v256, %v248
    %v329 = vpack.c.b16 %v257, %v249
    %v330 = vpack.c.b16 %v258, %v250
    %v331 = vpack.c.b16 %v259, %v251
    %v332 = vpack.c.b16 %v260, %v252
    %v333 = vpack.c.b16 %v269, %v261
    %v334 = vpack.c.b16 %v270, %v262
    %v335 = vpack.c.b16 %v271, %v263
    %v336 = vpack.c.b16 %v272, %v264
    %v337 = vpack.c.b16 %v273, %v265
    %v338 = vpack.c.b16 %v274, %v266
    %v339 = vpack.c.b16 %v275, %v267
    %v340 = vpack.c.b16 %v276, %v268
    %405 = vmatprep.subr.bf16.mxu0 %v278
    %406 = vmatpush1.bf16.msra.mxu0 %v277
    %407 = vmatprep.subr.bf16.mxu0 %v286
    %408 = vmatpush1.bf16.msra.mxu0 %v285
    %409 = vmatprep.subr.bf16.mxu0 %v294
    %410 = vmatpush1.bf16.msra.mxu0 %v293
    %411 = vmatprep.subr.bf16.mxu0 %v302
    %412 = vmatpush1.bf16.msra.mxu0 %v301
    %413 = vmatprep.subr.bf16.mxu0 %v310
    %414 = vmatpush1.bf16.msra.mxu0 %v309
    %415 = vmatprep.subr.bf16.mxu0 %v318
    %416 = vmatpush1.bf16.msra.mxu0 %v317
    %417 = vmatprep.subr.bf16.mxu0 %v326
    %418 = vmatpush1.bf16.msra.mxu0 %v325
    %419 = vmatprep.subr.bf16.mxu0 %v334
    %420 = vmatpush1.bf16.msra.mxu0 %v333
    %421 = vmatprep.subr.bf16.mxu0 0
    %422 = vmatpush1.bf16.msra.mxu0 0
    %423 = vmatprep.subr.bf16.mxu0 0
    %424 = vmatpush1.bf16.msra.mxu0 0
    %425 = vmatprep.subr.bf16.mxu0 0
    %426 = vmatpush1.bf16.msra.mxu0 0
    %427 = vmatprep.subr.bf16.mxu0 0
    %428 = vmatpush1.bf16.msra.mxu0 0
    %429 = vmatprep.subr.bf16.mxu0 0
    %430 = vmatpush1.bf16.msra.mxu0 0
    %431 = vmatprep.subr.bf16.mxu0 0
    %432 = vmatpush1.bf16.msra.mxu0 0
    %433 = vmatprep.subr.bf16.mxu0 0
    %434 = vmatpush1.bf16.msra.mxu0 0
    %435 = vmatprep.subr.bf16.mxu0 0
    %436 = vmatpush1.bf16.msra.mxu0 0
    %437 = vmatprep.mubr.bf16.mxu0 0
    %438 = vmatmul.mubr.bf16.gmra.mrb[0].mxu0 %v83
    %v439 = vpop.f32.mrb[0].mxu0
    %v440 = vadd.f32 0.0, %v439
    %v441 = vpop.f32.mrb[0].mxu0
    %v442 = vadd.f32 0.0, %v441
    %v443 = vpop.f32.mrb[0].mxu0
    %v444 = vadd.f32 0.0, %v443
    %v445 = vpop.f32.mrb[0].mxu0
    %v446 = vadd.f32 0.0, %v445
    %447 = vdwg.mxu0
    %448 = vmatprep.subr.bf16.mxu0 %v280
    %449 = vmatpush1.bf16.msra.mxu0 %v279
    %450 = vmatprep.subr.bf16.mxu0 %v288
    %451 = vmatpush1.bf16.msra.mxu0 %v287
    %452 = vmatprep.subr.bf16.mxu0 %v296
    %453 = vmatpush1.bf16.msra.mxu0 %v295
    %454 = vmatprep.subr.bf16.mxu0 %v304
    %455 = vmatpush1.bf16.msra.mxu0 %v303
    %456 = vmatprep.subr.bf16.mxu0 %v312
    %457 = vmatpush1.bf16.msra.mxu0 %v311
    %458 = vmatprep.subr.bf16.mxu0 %v320
    %459 = vmatpush1.bf16.msra.mxu0 %v319
    %460 = vmatprep.subr.bf16.mxu0 %v328
    %461 = vmatpush1.bf16.msra.mxu0 %v327
    %462 = vmatprep.subr.bf16.mxu0 %v336
    %463 = vmatpush1.bf16.msra.mxu0 %v335
    %464 = vmatprep.subr.bf16.mxu0 0
    %465 = vmatpush1.bf16.msra.mxu0 0
    %466 = vmatprep.subr.bf16.mxu0 0
    %467 = vmatpush1.bf16.msra.mxu0 0
    %468 = vmatprep.subr.bf16.mxu0 0
    %469 = vmatpush1.bf16.msra.mxu0 0
    %470 = vmatprep.subr.bf16.mxu0 0
    %471 = vmatpush1.bf16.msra.mxu0 0
    %472 = vmatprep.subr.bf16.mxu0 0
    %473 = vmatpush1.bf16.msra.mxu0 0
    %474 = vmatprep.subr.bf16.mxu0 0
    %475 = vmatpush1.bf16.msra.mxu0 0
    %476 = vmatprep.subr.bf16.mxu0 0
    %477 = vmatpush1.bf16.msra.mxu0 0
    %478 = vmatprep.subr.bf16.mxu0 0
    %479 = vmatpush1.bf16.msra.mxu0 0
    %480 = vmatprep.mubr.bf16.mxu0 0
    %481 = vmatmul.mubr.bf16.gmra.mrb[0].mxu0 %v83
    %v482 = vpop.f32.mrb[0].mxu0
    %v483 = vadd.f32 0.0, %v482
    %v484 = vpop.f32.mrb[0].mxu0
    %v485 = vadd.f32 0.0, %v484
    %v486 = vpop.f32.mrb[0].mxu0
    %v487 = vadd.f32 0.0, %v486
    %v488 = vpop.f32.mrb[0].mxu0
    %v489 = vadd.f32 0.0, %v488
    %490 = vdwg.mxu0
    %491 = vmatprep.subr.bf16.mxu0 %v282
    %492 = vmatpush1.bf16.msra.mxu0 %v281
    %493 = vmatprep.subr.bf16.mxu0 %v290
    %494 = vmatpush1.bf16.msra.mxu0 %v289
    %495 = vmatprep.subr.bf16.mxu0 %v298
    %496 = vmatpush1.bf16.msra.mxu0 %v297
    %497 = vmatprep.subr.bf16.mxu0 %v306
    %498 = vmatpush1.bf16.msra.mxu0 %v305
    %499 = vmatprep.subr.bf16.mxu0 %v314
    %500 = vmatpush1.bf16.msra.mxu0 %v313
    %501 = vmatprep.subr.bf16.mxu0 %v322
    %502 = vmatpush1.bf16.msra.mxu0 %v321
    %503 = vmatprep.subr.bf16.mxu0 %v330
    %504 = vmatpush1.bf16.msra.mxu0 %v329
    %505 = vmatprep.subr.bf16.mxu0 %v338
    %506 = vmatpush1.bf16.msra.mxu0 %v337
    %507 = vmatprep.subr.bf16.mxu0 0
    %508 = vmatpush1.bf16.msra.mxu0 0
    %509 = vmatprep.subr.bf16.mxu0 0
    %510 = vmatpush1.bf16.msra.mxu0 0
    %511 = vmatprep.subr.bf16.mxu0 0
    %512 = vmatpush1.bf16.msra.mxu0 0
    %513 = vmatprep.subr.bf16.mxu0 0
    %514 = vmatpush1.bf16.msra.mxu0 0
    %515 = vmatprep.subr.bf16.mxu0 0
    %516 = vmatpush1.bf16.msra.mxu0 0
    %517 = vmatprep.subr.bf16.mxu0 0
    %518 = vmatpush1.bf16.msra.mxu0 0
    %519 = vmatprep.subr.bf16.mxu0 0
    %520 = vmatpush1.bf16.msra.mxu0 0
    %521 = vmatprep.subr.bf16.mxu0 0
    %522 = vmatpush1.bf16.msra.mxu0 0
    %523 = vmatprep.mubr.bf16.mxu0 0
    %524 = vmatmul.mubr.bf16.gmra.mrb[0].mxu0 %v83
    %v525 = vpop.f32.mrb[0].mxu0
    %v526 = vadd.f32 0.0, %v525
    %v527 = vpop.f32.mrb[0].mxu0
    %v528 = vadd.f32 0.0, %v527
    %v529 = vpop.f32.mrb[0].mxu0
    %v530 = vadd.f32 0.0, %v529
    %v531 = vpop.f32.mrb[0].mxu0
    %v532 = vadd.f32 0.0, %v531
    %533 = vdwg.mxu0
    %534 = vmatprep.subr.bf16.mxu0 %v284
    %535 = vmatpush1.bf16.msra.mxu0 %v283
    %536 = vmatprep.subr.bf16.mxu0 %v292
    %537 = vmatpush1.bf16.msra.mxu0 %v291
    %538 = vmatprep.subr.bf16.mxu0 %v300
    %539 = vmatpush1.bf16.msra.mxu0 %v299
    %540 = vmatprep.subr.bf16.mxu0 %v308
    %541 = vmatpush1.bf16.msra.mxu0 %v307
    %542 = vmatprep.subr.bf16.mxu0 %v316
    %543 = vmatpush1.bf16.msra.mxu0 %v315
    %544 = vmatprep.subr.bf16.mxu0 %v324
    %545 = vmatpush1.bf16.msra.mxu0 %v323
    %546 = vmatprep.subr.bf16.mxu0 %v332
    %547 = vmatpush1.bf16.msra.mxu0 %v331
    %548 = vmatprep.subr.bf16.mxu0 %v340
    %549 = vmatpush1.bf16.msra.mxu0 %v339
    %550 = vmatprep.subr.bf16.mxu0 0
    %551 = vmatpush1.bf16.msra.mxu0 0
    %552 = vmatprep.subr.bf16.mxu0 0
    %553 = vmatpush1.bf16.msra.mxu0 0
    %554 = vmatprep.subr.bf16.mxu0 0
    %555 = vmatpush1.bf16.msra.mxu0 0
    %556 = vmatprep.subr.bf16.mxu0 0
    %557 = vmatpush1.bf16.msra.mxu0 0
    %558 = vmatprep.subr.bf16.mxu0 0
    %559 = vmatpush1.bf16.msra.mxu0 0
    %560 = vmatprep.subr.bf16.mxu0 0
    %561 = vmatpush1.bf16.msra.mxu0 0
    %562 = vmatprep.subr.bf16.mxu0 0
    %563 = vmatpush1.bf16.msra.mxu0 0
    %564 = vmatprep.subr.bf16.mxu0 0
    %565 = vmatpush1.bf16.msra.mxu0 0
    %566 = vmatprep.mubr.bf16.mxu0 0
    %567 = vmatmul.mubr.bf16.gmra.mrb[0].mxu0 %v83
    %v568 = vpop.f32.mrb[0].mxu0
    %v569 = vadd.f32 0.0, %v568
    %v570 = vpop.f32.mrb[0].mxu0
    %v571 = vadd.f32 0.0, %v570
    %v572 = vpop.f32.mrb[0].mxu0
    %v573 = vadd.f32 0.0, %v572
    %v574 = vpop.f32.mrb[0].mxu0
    %v575 = vadd.f32 0.0, %v574
    %576 = vdwg.mxu0
    %577 = vst [vmem:[#allocation2] sm:$0xff] %v440
    %578 = vst [vmem:[#allocation2 + $0x8] sm:$0xff] %v442
    %579 = vst [vmem:[#allocation2 + $0x10] sm:$0xff] %v483
    %580 = vst [vmem:[#allocation2 + $0x18] sm:$0xff] %v485
    %581 = vst [vmem:[#allocation2 + $0x20] sm:$0xff] %v526
    %582 = vst [vmem:[#allocation2 + $0x28] sm:$0xff] %v528
    %583 = vst [vmem:[#allocation2 + $0x30] sm:$0xff] %v569
    %584 = vst [vmem:[#allocation2 + $0x38] sm:$0xff] %v571
    %585 = vst [vmem:[#allocation2 + $0x40] sm:$0xff] %v444
    %586 = vst [vmem:[#allocation2 + $0x48] sm:$0xff] %v446
    %587 = vst [vmem:[#allocation2 + $0x50] sm:$0xff] %v487
    %588 = vst [vmem:[#allocation2 + $0x58] sm:$0xff] %v489
    %589 = vst [vmem:[#allocation2 + $0x60] sm:$0xff] %v530
    %590 = vst [vmem:[#allocation2 + $0x68] sm:$0xff] %v532
    %591 = vst [vmem:[#allocation2 + $0x70] sm:$0xff] %v573
    %592 = vst [vmem:[#allocation2 + $0x78] sm:$0xff] %v575
    // Predicated region
    $region10: #{margin_head_forward.5} parent=1 // pred_check
      _
    $region11: #{margin_head_forward.5} parent=1 // pred_check_branch
      %594 = sbr.rel (0) target = $region13
    $region12: #{margin_head_forward.5} parent=1 // pred_region
      %s596 = ssub.s32 2048, 2048
      %597 = vsyncadd [#allocation3], %s596
      %s598 = sshll.u32 [#allocation2], 4
      %s599 = int_to_ptr.vmem [resolvable:$true] %s598
      %604 = dma.vmem_to_hbm [thread:$0]  %s599, 2048, %s2, [#allocation3], 1024, 1024, 64
    $region13: #{margin_head_forward.5} parent=1 // pred_fallthru
      _
    // Predicated region
    $region14: #{margin_head_forward.5} parent=1 // pred_check
      _
    $region15: #{margin_head_forward.5} parent=1 // pred_check_branch
      %606 = sbr.rel (0) target = $region17
    $region16: #{margin_head_forward.5} parent=1 // pred_region
      %607 = dma.done [#allocation3], 2048
    $region17: #{margin_head_forward.5} parent=1 // pred_fallthru
      _
    %608 = vsyncpa [#allocation3], 1

// kernel: margin_head_forward.3
$region0: #{margin_head_forward.3}
  #allocation0 [shape = 'u32[]', space=smem, size = 0x4, offset = 0x4, fixed_abs, tag = 'smem constant byte address 0x4 - core index']
  #allocation1 [shape = 'u32[144,128]{1,0:T(1,128)}', space=vmem, size = 0x12000, scoped, tag = 'internal scratch']
  %s0 = inlined_call_operand.vmem [shape: f32[16,96,49], index: 0, kind: input, shape index: {}]
  %s1 = inlined_call_operand.vmem [shape: f32[96,128], index: 1, kind: input, shape index: {}]
  %s2 = inlined_call_operand.vmem [shape: f32[16,128], index: 2, kind: output, shape index: {0}]
  %s3 = inlined_call_operand.vmem [shape: f32[1,1,128], index: 3, kind: output, shape index: {1}]
  %s4 = inlined_call_operand.vmem [shape: f32[1,1,128], index: 4, kind: output, shape index: {2}]
  %5 = xla_tuple %s2, %s3, %s4
  %s6 = sld [smem:[#allocation0]]
  $region34: #{margin_head_forward.3} parent=0
    _
  %s8 = ssub.s32 1, %s6
  %s9 = scalar_select 0, %s8, %s6
  // Predicated region
  $region2: #{margin_head_forward.3} parent=0 // pred_check
    _
  $region3: #{margin_head_forward.3} parent=0 // pred_check_branch
    %11 = sbr.rel (0) target = $region5
  $region4: #{margin_head_forward.3} parent=0 // pred_region
    _
  $region5: #{margin_head_forward.3} parent=0 // pred_fallthru
    _
  // Predicated region
  $region6: #{margin_head_forward.3} parent=0 // pred_check
    _
  $region7: #{margin_head_forward.3} parent=0 // pred_check_branch
    %13 = sbr.rel (0) target = $region9
  $region8: #{margin_head_forward.3} parent=0 // pred_region
    _
  $region9: #{margin_head_forward.3} parent=0 // pred_fallthru
    _
  %v14 = vld [vmem:[%s0] sm:$0xff]
  %v15 = vld [vmem:[%s0 + $0x8] sm:$0xff]
  %v16 = vld [vmem:[%s0 + $0x10] sm:$0xff]
  %v17 = vld [vmem:[%s0 + $0x18] sm:$0xff]
  %v18 = vld [vmem:[%s0 + $0x20] sm:$0xff]
  %v19 = vld [vmem:[%s0 + $0x28] sm:$0xff]
  %v20 = vld [vmem:[%s0 + $0x30] sm:$0xff]
  %v21 = vld [vmem:[%s0 + $0x38] sm:$0xff]
  %v22 = vld [vmem:[%s0 + $0x40] sm:$0xff]
  %v23 = vld [vmem:[%s0 + $0x48] sm:$0xff]
  %v24 = vld [vmem:[%s0 + $0x50] sm:$0xff]
  %v25 = vld [vmem:[%s0 + $0x58] sm:$0xff]
  %v26 = vld [vmem:[%s0 + $0x60] sm:$0xff]
  %v27 = vld [vmem:[%s0 + $0x68] sm:$0xff]
  %v28 = vld [vmem:[%s0 + $0x70] sm:$0xff]
  %v29 = vld [vmem:[%s0 + $0x78] sm:$0xff]
  %v30 = vld [vmem:[%s0 + $0x80] sm:$0xff]
  %v31 = vld [vmem:[%s0 + $0x88] sm:$0xff]
  %v32 = vld [vmem:[%s0 + $0x90] sm:$0xff]
  %v33 = vld [vmem:[%s0 + $0x98] sm:$0xff]
  %v34 = vld [vmem:[%s0 + $0xa0] sm:$0xff]
  %v35 = vld [vmem:[%s0 + $0xa8] sm:$0xff]
  %v36 = vld [vmem:[%s0 + $0xb0] sm:$0xff]
  %v37 = vld [vmem:[%s0 + $0xb8] sm:$0xff]
  %v38 = vld [vmem:[%s0 + $0xc0] sm:$0xff]
  %v39 = vld [vmem:[%s0 + $0xc8] sm:$0xff]
  %v40 = vld [vmem:[%s0 + $0xd0] sm:$0xff]
  %v41 = vld [vmem:[%s0 + $0xd8] sm:$0xff]
  %v42 = vld [vmem:[%s0 + $0xe0] sm:$0xff]
  %v43 = vld [vmem:[%s0 + $0xe8] sm:$0xff]
  %v44 = vld [vmem:[%s0 + $0xf0] sm:$0xff]
  %v45 = vld [vmem:[%s0 + $0xf8] sm:$0xff]
  %v46 = vld [vmem:[%s0 + $0x100] sm:$0xff]
  %v47 = vld [vmem:[%s0 + $0x108] sm:$0xff]
  %v48 = vld [vmem:[%s0 + $0x110] sm:$0xff]
  %v49 = vld [vmem:[%s0 + $0x118] sm:$0xff]
  %v50 = vld [vmem:[%s0 + $0x120] sm:$0xff]
  %v51 = vld [vmem:[%s0 + $0x128] sm:$0xff]
  %v52 = vld [vmem:[%s0 + $0x130] sm:$0xff]
  %v53 = vld [vmem:[%s0 + $0x138] sm:$0xff]
  %v54 = vld [vmem:[%s0 + $0x140] sm:$0xff]
  %v55 = vld [vmem:[%s0 + $0x148] sm:$0xff]
  %v56 = vld [vmem:[%s0 + $0x150] sm:$0xff]
  %v57 = vld [vmem:[%s0 + $0x158] sm:$0xff]
  %v58 = vld [vmem:[%s0 + $0x160] sm:$0xff]
  %v59 = vld [vmem:[%s0 + $0x168] sm:$0xff]
  %v60 = vld [vmem:[%s0 + $0x170] sm:$0xff]
  %v61 = vld [vmem:[%s0 + $0x178] sm:$0xff]
  %v62 = vld [vmem:[%s0 + $0x180] sm:$0xff]
  %v63 = vld [vmem:[%s0 + $0x188] sm:$0xff]
  %v64 = vld [vmem:[%s0 + $0x190] sm:$0xff]
  %v65 = vld [vmem:[%s0 + $0x198] sm:$0xff]
  %v66 = vld [vmem:[%s0 + $0x1a0] sm:$0xff]
  %v67 = vld [vmem:[%s0 + $0x1a8] sm:$0xff]
  %v68 = vld [vmem:[%s0 + $0x1b0] sm:$0xff]
  %v69 = vld [vmem:[%s0 + $0x1b8] sm:$0xff]
  %v70 = vld [vmem:[%s0 + $0x1c0] sm:$0xff]
  %v71 = vld [vmem:[%s0 + $0x1c8] sm:$0xff]
  %v72 = vld [vmem:[%s0 + $0x1d0] sm:$0xff]
  %v73 = vld [vmem:[%s0 + $0x1d8] sm:$0xff]
  %v74 = vld [vmem:[%s0 + $0x1e0] sm:$0xff]
  %v75 = vld [vmem:[%s0 + $0x1e8] sm:$0xff]
  %v76 = vld [vmem:[%s0 + $0x1f0] sm:$0xff]
  %v77 = vld [vmem:[%s0 + $0x1f8] sm:$0xff]
  %v78 = vld [vmem:[%s0 + $0x200] sm:$0xff]
  %v79 = vld [vmem:[%s0 + $0x208] sm:$0xff]
  %v80 = vld [vmem:[%s0 + $0x210] sm:$0xff]
  %v81 = vld [vmem:[%s0 + $0x218] sm:$0xff]
  %v82 = vld [vmem:[%s0 + $0x220] sm:$0xff]
  %v83 = vld [vmem:[%s0 + $0x228] sm:$0xff]
  %v84 = vld [vmem:[%s0 + $0x230] sm:$0xff]
  %v85 = vld [vmem:[%s0 + $0x238] sm:$0xff]
  %v86 = vld [vmem:[%s0 + $0x240] sm:$0xff]
  %v87 = vld [vmem:[%s0 + $0x248] sm:$0xff]
  %v88 = vld [vmem:[%s0 + $0x250] sm:$0xff]
  %v89 = vld [vmem:[%s0 + $0x258] sm:$0xff]
  %v90 = vld [vmem:[%s0 + $0x260] sm:$0xff]
  %v91 = vld [vmem:[%s0 + $0x268] sm:$0xff]
  %v92 = vld [vmem:[%s0 + $0x270] sm:$0xff]
  %v93 = vld [vmem:[%s0 + $0x278] sm:$0xff]
  %v94 = vld [vmem:[%s0 + $0x280] sm:$0xff]
  %v95 = vld [vmem:[%s0 + $0x288] sm:$0xff]
  %v96 = vld [vmem:[%s0 + $0x290] sm:$0xff]
  %v97 = vld [vmem:[%s0 + $0x298] sm:$0xff]
  %v98 = vld [vmem:[%s0 + $0x2a0] sm:$0xff]
  %v99 = vld [vmem:[%s0 + $0x2a8] sm:$0xff]
  %v100 = vld [vmem:[%s0 + $0x2b0] sm:$0xff]
  %v101 = vld [vmem:[%s0 + $0x2b8] sm:$0xff]
  %v102 = vld [vmem:[%s0 + $0x2c0] sm:$0xff]
  %v103 = vld [vmem:[%s0 + $0x2c8] sm:$0xff]
  %v104 = vld [vmem:[%s0 + $0x2d0] sm:$0xff]
  %v105 = vld [vmem:[%s0 + $0x2d8] sm:$0xff]
  %v106 = vld [vmem:[%s0 + $0x2e0] sm:$0xff]
  %v107 = vld [vmem:[%s0 + $0x2e8] sm:$0xff]
  %v108 = vld [vmem:[%s0 + $0x2f0] sm:$0xff]
  %v109 = vld [vmem:[%s0 + $0x2f8] sm:$0xff]
  %v110 = vld [vmem:[%s0 + $0x300] sm:$0xff]
  %v111 = vld [vmem:[%s0 + $0x308] sm:$0xff]
  %v112 = vld [vmem:[%s0 + $0x310] sm:$0xff]
  %v113 = vld [vmem:[%s0 + $0x318] sm:$0xff]
  %v114 = vld [vmem:[%s0 + $0x320] sm:$0xff]
  %v115 = vld [vmem:[%s0 + $0x328] sm:$0xff]
  %v116 = vld [vmem:[%s0 + $0x330] sm:$0xff]
  %v117 = vld [vmem:[%s0 + $0x338] sm:$0xff]
  %v118 = vld [vmem:[%s0 + $0x340] sm:$0xff]
  %v119 = vld [vmem:[%s0 + $0x348] sm:$0xff]
  %v120 = vld [vmem:[%s0 + $0x350] sm:$0xff]
  %v121 = vld [vmem:[%s0 + $0x358] sm:$0xff]
  %v122 = vld [vmem:[%s0 + $0x360] sm:$0xff]
  %v123 = vld [vmem:[%s0 + $0x368] sm:$0xff]
  %v124 = vld [vmem:[%s0 + $0x370] sm:$0xff]
  %v125 = vld [vmem:[%s0 + $0x378] sm:$0xff]
  %v126 = vld [vmem:[%s0 + $0x380] sm:$0xff]
  %v127 = vld [vmem:[%s0 + $0x388] sm:$0xff]
  %v128 = vld [vmem:[%s0 + $0x390] sm:$0xff]
  %v129 = vld [vmem:[%s0 + $0x398] sm:$0xff]
  %v130 = vld [vmem:[%s0 + $0x3a0] sm:$0xff]
  %v131 = vld [vmem:[%s0 + $0x3a8] sm:$0xff]
  %v132 = vld [vmem:[%s0 + $0x3b0] sm:$0xff]
  %v133 = vld [vmem:[%s0 + $0x3b8] sm:$0xff]
  %v134 = vld [vmem:[%s0 + $0x3c0] sm:$0xff]
  %v135 = vld [vmem:[%s0 + $0x3c8] sm:$0xff]
  %v136 = vld [vmem:[%s0 + $0x3d0] sm:$0xff]
  %v137 = vld [vmem:[%s0 + $0x3d8] sm:$0xff]
  %v138 = vld [vmem:[%s0 + $0x3e0] sm:$0xff]
  %v139 = vld [vmem:[%s0 + $0x3e8] sm:$0xff]
  %v140 = vld [vmem:[%s0 + $0x3f0] sm:$0xff]
  %v141 = vld [vmem:[%s0 + $0x3f8] sm:$0xff]
  %v142 = vld [vmem:[%s0 + $0x400] sm:$0xff]
  %v143 = vld [vmem:[%s0 + $0x408] sm:$0xff]
  %v144 = vld [vmem:[%s0 + $0x410] sm:$0xff]
  %v145 = vld [vmem:[%s0 + $0x418] sm:$0xff]
  %v146 = vld [vmem:[%s0 + $0x420] sm:$0xff]
  %v147 = vld [vmem:[%s0 + $0x428] sm:$0xff]
  %v148 = vld [vmem:[%s0 + $0x430] sm:$0xff]
  %v149 = vld [vmem:[%s0 + $0x438] sm:$0xff]
  %v150 = vld [vmem:[%s0 + $0x440] sm:$0xff]
  %v151 = vld [vmem:[%s0 + $0x448] sm:$0xff]
  %v152 = vld [vmem:[%s0 + $0x450] sm:$0xff]
  %v153 = vld [vmem:[%s0 + $0x458] sm:$0xff]
  %v154 = vld [vmem:[%s0 + $0x460] sm:$0xff]
  %v155 = vld [vmem:[%s0 + $0x468] sm:$0xff]
  %v156 = vld [vmem:[%s0 + $0x470] sm:$0xff]
  %v157 = vld [vmem:[%s0 + $0x478] sm:$0xff]
  %v158 = vld [vmem:[%s0 + $0x480] sm:$0xff]
  %v159 = vld [vmem:[%s0 + $0x488] sm:$0xff]
  %v160 = vld [vmem:[%s0 + $0x490] sm:$0xff]
  %v161 = vld [vmem:[%s0 + $0x498] sm:$0xff]
  %v162 = vld [vmem:[%s0 + $0x4a0] sm:$0xff]
  %v163 = vld [vmem:[%s0 + $0x4a8] sm:$0xff]
  %v164 = vld [vmem:[%s0 + $0x4b0] sm:$0xff]
  %v165 = vld [vmem:[%s0 + $0x4b8] sm:$0xff]
  %v166 = vld [vmem:[%s0 + $0x4c0] sm:$0xff]
  %v167 = vld [vmem:[%s0 + $0x4c8] sm:$0xff]
  %v168 = vld [vmem:[%s0 + $0x4d0] sm:$0xff]
  %v169 = vld [vmem:[%s0 + $0x4d8] sm:$0xff]
  %v170 = vld [vmem:[%s0 + $0x4e0] sm:$0xff]
  %v171 = vld [vmem:[%s0 + $0x4e8] sm:$0xff]
  %v172 = vld [vmem:[%s0 + $0x4f0] sm:$0xff]
  %v173 = vld [vmem:[%s0 + $0x4f8] sm:$0xff]
  %v174 = vld [vmem:[%s0 + $0x500] sm:$0xff]
  %v175 = vld [vmem:[%s0 + $0x508] sm:$0xff]
  %v176 = vld [vmem:[%s0 + $0x510] sm:$0xff]
  %v177 = vld [vmem:[%s0 + $0x518] sm:$0xff]
  %v178 = vld [vmem:[%s0 + $0x520] sm:$0xff]
  %v179 = vld [vmem:[%s0 + $0x528] sm:$0xff]
  %v180 = vld [vmem:[%s0 + $0x530] sm:$0xff]
  %v181 = vld [vmem:[%s0 + $0x538] sm:$0xff]
  %v182 = vld [vmem:[%s0 + $0x540] sm:$0xff]
  %v183 = vld [vmem:[%s0 + $0x548] sm:$0xff]
  %v184 = vld [vmem:[%s0 + $0x550] sm:$0xff]
  %v185 = vld [vmem:[%s0 + $0x558] sm:$0xff]
  %v186 = vld [vmem:[%s0 + $0x560] sm:$0xff]
  %v187 = vld [vmem:[%s0 + $0x568] sm:$0xff]
  %v188 = vld [vmem:[%s0 + $0x570] sm:$0xff]
  %v189 = vld [vmem:[%s0 + $0x578] sm:$0xff]
  %v190 = vld [vmem:[%s0 + $0x580] sm:$0xff]
  %v191 = vld [vmem:[%s0 + $0x588] sm:$0xff]
  %v192 = vld [vmem:[%s0 + $0x590] sm:$0xff]
  %v193 = vld [vmem:[%s0 + $0x598] sm:$0xff]
  %v194 = vld [vmem:[%s0 + $0x5a0] sm:$0xff]
  %v195 = vld [vmem:[%s0 + $0x5a8] sm:$0xff]
  %v196 = vld [vmem:[%s0 + $0x5b0] sm:$0xff]
  %v197 = vld [vmem:[%s0 + $0x5b8] sm:$0xff]
  %v198 = vld [vmem:[%s0 + $0x5c0] sm:$0xff]
  %v199 = vld [vmem:[%s0 + $0x5c8] sm:$0xff]
  %v200 = vld [vmem:[%s0 + $0x5d0] sm:$0xff]
  %v201 = vld [vmem:[%s0 + $0x5d8] sm:$0xff]
  %v202 = vld [vmem:[%s0 + $0x5e0] sm:$0xff]
  %v203 = vld [vmem:[%s0 + $0x5e8] sm:$0xff]
  %v204 = vld [vmem:[%s0 + $0x5f0] sm:$0xff]
  %v205 = vld [vmem:[%s0 + $0x5f8] sm:$0xff]
  %vm206 = vcmask 400384
  %v207 = vsel %vm206, %v14, 0.0
  %208 = vadd.xlane.f32.xlu0 %v207
  %v209 = vpop.xlane.xlu0 %208
  %v210 = vsel %vm206, %v15, 0.0
  %211 = vadd.xlane.f32.xlu0 %v210
  %v212 = vpop.xlane.xlu0 %211
  %v213 = vsel %vm206, %v16, 0.0
  %214 = vadd.xlane.f32.xlu0 %v213
  %v215 = vpop.xlane.xlu0 %214
  %v216 = vsel %vm206, %v17, 0.0
  %217 = vadd.xlane.f32.xlu0 %v216
  %v218 = vpop.xlane.xlu0 %217
  %v219 = vsel %vm206, %v18, 0.0
  %220 = vadd.xlane.f32.xlu0 %v219
  %v221 = vpop.xlane.xlu0 %220
  %v222 = vsel %vm206, %v19, 0.0
  %223 = vadd.xlane.f32.xlu0 %v222
  %v224 = vpop.xlane.xlu0 %223
  %v225 = vsel %vm206, %v20, 0.0
  %226 = vadd.xlane.f32.xlu0 %v225
  %v227 = vpop.xlane.xlu0 %226
  %v228 = vsel %vm206, %v21, 0.0
  %229 = vadd.xlane.f32.xlu0 %v228
  %v230 = vpop.xlane.xlu0 %229
  %v231 = vsel %vm206, %v22, 0.0
  %232 = vadd.xlane.f32.xlu0 %v231
  %v233 = vpop.xlane.xlu0 %232
  %v234 = vsel %vm206, %v23, 0.0
  %235 = vadd.xlane.f32.xlu0 %v234
  %v236 = vpop.xlane.xlu0 %235
  %v237 = vsel %vm206, %v24, 0.0
  %238 = vadd.xlane.f32.xlu0 %v237
  %v239 = vpop.xlane.xlu0 %238
  %v240 = vsel %vm206, %v25, 0.0
  %241 = vadd.xlane.f32.xlu0 %v240
  %v242 = vpop.xlane.xlu0 %241
  %v243 = vsel %vm206, %v26, 0.0
  %244 = vadd.xlane.f32.xlu0 %v243
  %v245 = vpop.xlane.xlu0 %244
  %v246 = vsel %vm206, %v27, 0.0
  %247 = vadd.xlane.f32.xlu0 %v246
  %v248 = vpop.xlane.xlu0 %247
  %v249 = vsel %vm206, %v28, 0.0
  %250 = vadd.xlane.f32.xlu0 %v249
  %v251 = vpop.xlane.xlu0 %250
  %v252 = vsel %vm206, %v29, 0.0
  %253 = vadd.xlane.f32.xlu0 %v252
  %v254 = vpop.xlane.xlu0 %253
  %v255 = vsel %vm206, %v30, 0.0
  %256 = vadd.xlane.f32.xlu0 %v255
  %v257 = vpop.xlane.xlu0 %256
  %v258 = vsel %vm206, %v31, 0.0
  %259 = vadd.xlane.f32.xlu0 %v258
  %v260 = vpop.xlane.xlu0 %259
  %v261 = vsel %vm206, %v32, 0.0
  %262 = vadd.xlane.f32.xlu0 %v261
  %v263 = vpop.xlane.xlu0 %262
  %v264 = vsel %vm206, %v33, 0.0
  %265 = vadd.xlane.f32.xlu0 %v264
  %v266 = vpop.xlane.xlu0 %265
  %v267 = vsel %vm206, %v34, 0.0
  %268 = vadd.xlane.f32.xlu0 %v267
  %v269 = vpop.xlane.xlu0 %268
  %v270 = vsel %vm206, %v35, 0.0
  %271 = vadd.xlane.f32.xlu0 %v270
  %v272 = vpop.xlane.xlu0 %271
  %v273 = vsel %vm206, %v36, 0.0
  %274 = vadd.xlane.f32.xlu0 %v273
  %v275 = vpop.xlane.xlu0 %274
  %v276 = vsel %vm206, %v37, 0.0
  %277 = vadd.xlane.f32.xlu0 %v276
  %v278 = vpop.xlane.xlu0 %277
  %v279 = vsel %vm206, %v38, 0.0
  %280 = vadd.xlane.f32.xlu0 %v279
  %v281 = vpop.xlane.xlu0 %280
  %v282 = vsel %vm206, %v39, 0.0
  %283 = vadd.xlane.f32.xlu0 %v282
  %v284 = vpop.xlane.xlu0 %283
  %v285 = vsel %vm206, %v40, 0.0
  %286 = vadd.xlane.f32.xlu0 %v285
  %v287 = vpop.xlane.xlu0 %286
  %v288 = vsel %vm206, %v41, 0.0
  %289 = vadd.xlane.f32.xlu0 %v288
  %v290 = vpop.xlane.xlu0 %289
  %v291 = vsel %vm206, %v42, 0.0
  %292 = vadd.xlane.f32.xlu0 %v291
  %v293 = vpop.xlane.xlu0 %292
  %v294 = vsel %vm206, %v43, 0.0
  %295 = vadd.xlane.f32.xlu0 %v294
  %v296 = vpop.xlane.xlu0 %295
  %v297 = vsel %vm206, %v44, 0.0
  %298 = vadd.xlane.f32.xlu0 %v297
  %v299 = vpop.xlane.xlu0 %298
  %v300 = vsel %vm206, %v45, 0.0
  %301 = vadd.xlane.f32.xlu0 %v300
  %v302 = vpop.xlane.xlu0 %301
  %v303 = vsel %vm206, %v46, 0.0
  %304 = vadd.xlane.f32.xlu0 %v303
  %v305 = vpop.xlane.xlu0 %304
  %v306 = vsel %vm206, %v47, 0.0
  %307 = vadd.xlane.f32.xlu0 %v306
  %v308 = vpop.xlane.xlu0 %307
  %v309 = vsel %vm206, %v48, 0.0
  %310 = vadd.xlane.f32.xlu0 %v309
  %v311 = vpop.xlane.xlu0 %310
  %v312 = vsel %vm206, %v49, 0.0
  %313 = vadd.xlane.f32.xlu0 %v312
  %v314 = vpop.xlane.xlu0 %313
  %v315 = vsel %vm206, %v50, 0.0
  %316 = vadd.xlane.f32.xlu0 %v315
  %v317 = vpop.xlane.xlu0 %316
  %v318 = vsel %vm206, %v51, 0.0
  %319 = vadd.xlane.f32.xlu0 %v318
  %v320 = vpop.xlane.xlu0 %319
  %v321 = vsel %vm206, %v52, 0.0
  %322 = vadd.xlane.f32.xlu0 %v321
  %v323 = vpop.xlane.xlu0 %322
  %v324 = vsel %vm206, %v53, 0.0
  %325 = vadd.xlane.f32.xlu0 %v324
  %v326 = vpop.xlane.xlu0 %325
  %v327 = vsel %vm206, %v54, 0.0
  %328 = vadd.xlane.f32.xlu0 %v327
  %v329 = vpop.xlane.xlu0 %328
  %v330 = vsel %vm206, %v55, 0.0
  %331 = vadd.xlane.f32.xlu0 %v330
  %v332 = vpop.xlane.xlu0 %331
  %v333 = vsel %vm206, %v56, 0.0
  %334 = vadd.xlane.f32.xlu0 %v333
  %v335 = vpop.xlane.xlu0 %334
  %v336 = vsel %vm206, %v57, 0.0
  %337 = vadd.xlane.f32.xlu0 %v336
  %v338 = vpop.xlane.xlu0 %337
  %v339 = vsel %vm206, %v58, 0.0
  %340 = vadd.xlane.f32.xlu0 %v339
  %v341 = vpop.xlane.xlu0 %340
  %v342 = vsel %vm206, %v59, 0.0
  %343 = vadd.xlane.f32.xlu0 %v342
  %v344 = vpop.xlane.xlu0 %343
  %v345 = vsel %vm206, %v60, 0.0
  %346 = vadd.xlane.f32.xlu0 %v345
  %v347 = vpop.xlane.xlu0 %346
  %v348 = vsel %vm206, %v61, 0.0
  %349 = vadd.xlane.f32.xlu0 %v348
  %v350 = vpop.xlane.xlu0 %349
  %v351 = vsel %vm206, %v62, 0.0
  %352 = vadd.xlane.f32.xlu0 %v351
  %v353 = vpop.xlane.xlu0 %352
  %v354 = vsel %vm206, %v63, 0.0
  %355 = vadd.xlane.f32.xlu0 %v354
  %v356 = vpop.xlane.xlu0 %355
  %v357 = vsel %vm206, %v64, 0.0
  %358 = vadd.xlane.f32.xlu0 %v357
  %v359 = vpop.xlane.xlu0 %358
  %v360 = vsel %vm206, %v65, 0.0
  %361 = vadd.xlane.f32.xlu0 %v360
  %v362 = vpop.xlane.xlu0 %361
  %v363 = vsel %vm206, %v66, 0.0
  %364 = vadd.xlane.f32.xlu0 %v363
  %v365 = vpop.xlane.xlu0 %364
  %v366 = vsel %vm206, %v67, 0.0
  %367 = vadd.xlane.f32.xlu0 %v366
  %v368 = vpop.xlane.xlu0 %367
  %v369 = vsel %vm206, %v68, 0.0
  %370 = vadd.xlane.f32.xlu0 %v369
  %v371 = vpop.xlane.xlu0 %370
  %v372 = vsel %vm206, %v69, 0.0
  %373 = vadd.xlane.f32.xlu0 %v372
  %v374 = vpop.xlane.xlu0 %373
  %v375 = vsel %vm206, %v70, 0.0
  %376 = vadd.xlane.f32.xlu0 %v375
  %v377 = vpop.xlane.xlu0 %376
  %v378 = vsel %vm206, %v71, 0.0
  %379 = vadd.xlane.f32.xlu0 %v378
  %v380 = vpop.xlane.xlu0 %379
  %v381 = vsel %vm206, %v72, 0.0
  %382 = vadd.xlane.f32.xlu0 %v381
  %v383 = vpop.xlane.xlu0 %382
  %v384 = vsel %vm206, %v73, 0.0
  %385 = vadd.xlane.f32.xlu0 %v384
  %v386 = vpop.xlane.xlu0 %385
  %v387 = vsel %vm206, %v74, 0.0
  %388 = vadd.xlane.f32.xlu0 %v387
  %v389 = vpop.xlane.xlu0 %388
  %v390 = vsel %vm206, %v75, 0.0
  %391 = vadd.xlane.f32.xlu0 %v390
  %v392 = vpop.xlane.xlu0 %391
  %v393 = vsel %vm206, %v76, 0.0
  %394 = vadd.xlane.f32.xlu0 %v393
  %v395 = vpop.xlane.xlu0 %394
  %v396 = vsel %vm206, %v77, 0.0
  %397 = vadd.xlane.f32.xlu0 %v396
  %v398 = vpop.xlane.xlu0 %397
  %v399 = vsel %vm206, %v78, 0.0
  %400 = vadd.xlane.f32.xlu0 %v399
  %v401 = vpop.xlane.xlu0 %400
  %v402 = vsel %vm206, %v79, 0.0
  %403 = vadd.xlane.f32.xlu0 %v402
  %v404 = vpop.xlane.xlu0 %403
  %v405 = vsel %vm206, %v80, 0.0
  %406 = vadd.xlane.f32.xlu0 %v405
  %v407 = vpop.xlane.xlu0 %406
  %v408 = vsel %vm206, %v81, 0.0
  %409 = vadd.xlane.f32.xlu0 %v408
  %v410 = vpop.xlane.xlu0 %409
  %v411 = vsel %vm206, %v82, 0.0
  %412 = vadd.xlane.f32.xlu0 %v411
  %v413 = vpop.xlane.xlu0 %412
  %v414 = vsel %vm206, %v83, 0.0
  %415 = vadd.xlane.f32.xlu0 %v414
  %v416 = vpop.xlane.xlu0 %415
  %v417 = vsel %vm206, %v84, 0.0
  %418 = vadd.xlane.f32.xlu0 %v417
  %v419 = vpop.xlane.xlu0 %418
  %v420 = vsel %vm206, %v85, 0.0
  %421 = vadd.xlane.f32.xlu0 %v420
  %v422 = vpop.xlane.xlu0 %421
  %v423 = vsel %vm206, %v86, 0.0
  %424 = vadd.xlane.f32.xlu0 %v423
  %v425 = vpop.xlane.xlu0 %424
  %v426 = vsel %vm206, %v87, 0.0
  %427 = vadd.xlane.f32.xlu0 %v426
  %v428 = vpop.xlane.xlu0 %427
  %v429 = vsel %vm206, %v88, 0.0
  %430 = vadd.xlane.f32.xlu0 %v429
  %v431 = vpop.xlane.xlu0 %430
  %v432 = vsel %vm206, %v89, 0.0
  %433 = vadd.xlane.f32.xlu0 %v432
  %v434 = vpop.xlane.xlu0 %433
  %v435 = vsel %vm206, %v90, 0.0
  %436 = vadd.xlane.f32.xlu0 %v435
  %v437 = vpop.xlane.xlu0 %436
  %v438 = vsel %vm206, %v91, 0.0
  %439 = vadd.xlane.f32.xlu0 %v438
  %v440 = vpop.xlane.xlu0 %439
  %v441 = vsel %vm206, %v92, 0.0
  %442 = vadd.xlane.f32.xlu0 %v441
  %v443 = vpop.xlane.xlu0 %442
  %v444 = vsel %vm206, %v93, 0.0
  %445 = vadd.xlane.f32.xlu0 %v444
  %v446 = vpop.xlane.xlu0 %445
  %v447 = vsel %vm206, %v94, 0.0
  %448 = vadd.xlane.f32.xlu0 %v447
  %v449 = vpop.xlane.xlu0 %448
  %v450 = vsel %vm206, %v95, 0.0
  %451 = vadd.xlane.f32.xlu0 %v450
  %v452 = vpop.xlane.xlu0 %451
  %v453 = vsel %vm206, %v96, 0.0
  %454 = vadd.xlane.f32.xlu0 %v453
  %v455 = vpop.xlane.xlu0 %454
  %v456 = vsel %vm206, %v97, 0.0
  %457 = vadd.xlane.f32.xlu0 %v456
  %v458 = vpop.xlane.xlu0 %457
  %v459 = vsel %vm206, %v98, 0.0
  %460 = vadd.xlane.f32.xlu0 %v459
  %v461 = vpop.xlane.xlu0 %460
  %v462 = vsel %vm206, %v99, 0.0
  %463 = vadd.xlane.f32.xlu0 %v462
  %v464 = vpop.xlane.xlu0 %463
  %v465 = vsel %vm206, %v100, 0.0
  %466 = vadd.xlane.f32.xlu0 %v465
  %v467 = vpop.xlane.xlu0 %466
  %v468 = vsel %vm206, %v101, 0.0
  %469 = vadd.xlane.f32.xlu0 %v468
  %v470 = vpop.xlane.xlu0 %469
  %v471 = vsel %vm206, %v102, 0.0
  %472 = vadd.xlane.f32.xlu0 %v471
  %v473 = vpop.xlane.xlu0 %472
  %v474 = vsel %vm206, %v103, 0.0
  %475 = vadd.xlane.f32.xlu0 %v474
  %v476 = vpop.xlane.xlu0 %475
  %v477 = vsel %vm206, %v104, 0.0
  %478 = vadd.xlane.f32.xlu0 %v477
  %v479 = vpop.xlane.xlu0 %478
  %v480 = vsel %vm206, %v105, 0.0
  %481 = vadd.xlane.f32.xlu0 %v480
  %v482 = vpop.xlane.xlu0 %481
  %v483 = vsel %vm206, %v106, 0.0
  %484 = vadd.xlane.f32.xlu0 %v483
  %v485 = vpop.xlane.xlu0 %484
  %v486 = vsel %vm206, %v107, 0.0
  %487 = vadd.xlane.f32.xlu0 %v486
  %v488 = vpop.xlane.xlu0 %487
  %v489 = vsel %vm206, %v108, 0.0
  %490 = vadd.xlane.f32.xlu0 %v489
  %v491 = vpop.xlane.xlu0 %490
  %v492 = vsel %vm206, %v109, 0.0
  %493 = vadd.xlane.f32.xlu0 %v492
  %v494 = vpop.xlane.xlu0 %493
  %v495 = vsel %vm206, %v110, 0.0
  %496 = vadd.xlane.f32.xlu0 %v495
  %v497 = vpop.xlane.xlu0 %496
  %v498 = vsel %vm206, %v111, 0.0
  %499 = vadd.xlane.f32.xlu0 %v498
  %v500 = vpop.xlane.xlu0 %499
  %v501 = vsel %vm206, %v112, 0.0
  %502 = vadd.xlane.f32.xlu0 %v501
  %v503 = vpop.xlane.xlu0 %502
  %v504 = vsel %vm206, %v113, 0.0
  %505 = vadd.xlane.f32.xlu0 %v504
  %v506 = vpop.xlane.xlu0 %505
  %v507 = vsel %vm206, %v114, 0.0
  %508 = vadd.xlane.f32.xlu0 %v507
  %v509 = vpop.xlane.xlu0 %508
  %v510 = vsel %vm206, %v115, 0.0
  %511 = vadd.xlane.f32.xlu0 %v510
  %v512 = vpop.xlane.xlu0 %511
  %v513 = vsel %vm206, %v116, 0.0
  %514 = vadd.xlane.f32.xlu0 %v513
  %v515 = vpop.xlane.xlu0 %514
  %v516 = vsel %vm206, %v117, 0.0
  %517 = vadd.xlane.f32.xlu0 %v516
  %v518 = vpop.xlane.xlu0 %517
  %v519 = vsel %vm206, %v118, 0.0
  %520 = vadd.xlane.f32.xlu0 %v519
  %v521 = vpop.xlane.xlu0 %520
  %v522 = vsel %vm206, %v119, 0.0
  %523 = vadd.xlane.f32.xlu0 %v522
  %v524 = vpop.xlane.xlu0 %523
  %v525 = vsel %vm206, %v120, 0.0
  %526 = vadd.xlane.f32.xlu0 %v525
  %v527 = vpop.xlane.xlu0 %526
  %v528 = vsel %vm206, %v121, 0.0
  %529 = vadd.xlane.f32.xlu0 %v528
  %v530 = vpop.xlane.xlu0 %529
  %v531 = vsel %vm206, %v122, 0.0
  %532 = vadd.xlane.f32.xlu0 %v531
  %v533 = vpop.xlane.xlu0 %532
  %v534 = vsel %vm206, %v123, 0.0
  %535 = vadd.xlane.f32.xlu0 %v534
  %v536 = vpop.xlane.xlu0 %535
  %v537 = vsel %vm206, %v124, 0.0
  %538 = vadd.xlane.f32.xlu0 %v537
  %v539 = vpop.xlane.xlu0 %538
  %v540 = vsel %vm206, %v125, 0.0
  %541 = vadd.xlane.f32.xlu0 %v540
  %v542 = vpop.xlane.xlu0 %541
  %v543 = vsel %vm206, %v126, 0.0
  %544 = vadd.xlane.f32.xlu0 %v543
  %v545 = vpop.xlane.xlu0 %544
  %v546 = vsel %vm206, %v127, 0.0
  %547 = vadd.xlane.f32.xlu0 %v546
  %v548 = vpop.xlane.xlu0 %547
  %v549 = vsel %vm206, %v128, 0.0
  %550 = vadd.xlane.f32.xlu0 %v549
  %v551 = vpop.xlane.xlu0 %550
  %v552 = vsel %vm206, %v129, 0.0
  %553 = vadd.xlane.f32.xlu0 %v552
  %v554 = vpop.xlane.xlu0 %553
  %v555 = vsel %vm206, %v130, 0.0
  %556 = vadd.xlane.f32.xlu0 %v555
  %v557 = vpop.xlane.xlu0 %556
  %v558 = vsel %vm206, %v131, 0.0
  %559 = vadd.xlane.f32.xlu0 %v558
  %v560 = vpop.xlane.xlu0 %559
  %v561 = vsel %vm206, %v132, 0.0
  %562 = vadd.xlane.f32.xlu0 %v561
  %v563 = vpop.xlane.xlu0 %562
  %v564 = vsel %vm206, %v133, 0.0
  %565 = vadd.xlane.f32.xlu0 %v564
  %v566 = vpop.xlane.xlu0 %565
  %v567 = vsel %vm206, %v134, 0.0
  %568 = vadd.xlane.f32.xlu0 %v567
  %v569 = vpop.xlane.xlu0 %568
  %v570 = vsel %vm206, %v135, 0.0
  %571 = vadd.xlane.f32.xlu0 %v570
  %v572 = vpop.xlane.xlu0 %571
  %v573 = vsel %vm206, %v136, 0.0
  %574 = vadd.xlane.f32.xlu0 %v573
  %v575 = vpop.xlane.xlu0 %574
  %v576 = vsel %vm206, %v137, 0.0
  %577 = vadd.xlane.f32.xlu0 %v576
  %v578 = vpop.xlane.xlu0 %577
  %v579 = vsel %vm206, %v138, 0.0
  %580 = vadd.xlane.f32.xlu0 %v579
  %v581 = vpop.xlane.xlu0 %580
  %v582 = vsel %vm206, %v139, 0.0
  %583 = vadd.xlane.f32.xlu0 %v582
  %v584 = vpop.xlane.xlu0 %583
  %v585 = vsel %vm206, %v140, 0.0
  %586 = vadd.xlane.f32.xlu0 %v585
  %v587 = vpop.xlane.xlu0 %586
  %v588 = vsel %vm206, %v141, 0.0
  %589 = vadd.xlane.f32.xlu0 %v588
  %v590 = vpop.xlane.xlu0 %589
  %v591 = vsel %vm206, %v142, 0.0
  %592 = vadd.xlane.f32.xlu0 %v591
  %v593 = vpop.xlane.xlu0 %592
  %v594 = vsel %vm206, %v143, 0.0
  %595 = vadd.xlane.f32.xlu0 %v594
  %v596 = vpop.xlane.xlu0 %595
  %v597 = vsel %vm206, %v144, 0.0
  %598 = vadd.xlane.f32.xlu0 %v597
  %v599 = vpop.xlane.xlu0 %598
  %v600 = vsel %vm206, %v145, 0.0
  %601 = vadd.xlane.f32.xlu0 %v600
  %v602 = vpop.xlane.xlu0 %601
  %v603 = vsel %vm206, %v146, 0.0
  %604 = vadd.xlane.f32.xlu0 %v603
  %v605 = vpop.xlane.xlu0 %604
  %v606 = vsel %vm206, %v147, 0.0
  %607 = vadd.xlane.f32.xlu0 %v606
  %v608 = vpop.xlane.xlu0 %607
  %v609 = vsel %vm206, %v148, 0.0
  %610 = vadd.xlane.f32.xlu0 %v609
  %v611 = vpop.xlane.xlu0 %610
  %v612 = vsel %vm206, %v149, 0.0
  %613 = vadd.xlane.f32.xlu0 %v612
  %v614 = vpop.xlane.xlu0 %613
  %v615 = vsel %vm206, %v150, 0.0
  %616 = vadd.xlane.f32.xlu0 %v615
  %v617 = vpop.xlane.xlu0 %616
  %v618 = vsel %vm206, %v151, 0.0
  %619 = vadd.xlane.f32.xlu0 %v618
  %v620 = vpop.xlane.xlu0 %619
  %v621 = vsel %vm206, %v152, 0.0
  %622 = vadd.xlane.f32.xlu0 %v621
  %v623 = vpop.xlane.xlu0 %622
  %v624 = vsel %vm206, %v153, 0.0
  %625 = vadd.xlane.f32.xlu0 %v624
  %v626 = vpop.xlane.xlu0 %625
  %v627 = vsel %vm206, %v154, 0.0
  %628 = vadd.xlane.f32.xlu0 %v627
  %v629 = vpop.xlane.xlu0 %628
  %v630 = vsel %vm206, %v155, 0.0
  %631 = vadd.xlane.f32.xlu0 %v630
  %v632 = vpop.xlane.xlu0 %631
  %v633 = vsel %vm206, %v156, 0.0
  %634 = vadd.xlane.f32.xlu0 %v633
  %v635 = vpop.xlane.xlu0 %634
  %v636 = vsel %vm206, %v157, 0.0
  %637 = vadd.xlane.f32.xlu0 %v636
  %v638 = vpop.xlane.xlu0 %637
  %v639 = vsel %vm206, %v158, 0.0
  %640 = vadd.xlane.f32.xlu0 %v639
  %v641 = vpop.xlane.xlu0 %640
  %v642 = vsel %vm206, %v159, 0.0
  %643 = vadd.xlane.f32.xlu0 %v642
  %v644 = vpop.xlane.xlu0 %643
  %v645 = vsel %vm206, %v160, 0.0
  %646 = vadd.xlane.f32.xlu0 %v645
  %v647 = vpop.xlane.xlu0 %646
  %v648 = vsel %vm206, %v161, 0.0
  %649 = vadd.xlane.f32.xlu0 %v648
  %v650 = vpop.xlane.xlu0 %649
  %v651 = vsel %vm206, %v162, 0.0
  %652 = vadd.xlane.f32.xlu0 %v651
  %v653 = vpop.xlane.xlu0 %652
  %v654 = vsel %vm206, %v163, 0.0
  %655 = vadd.xlane.f32.xlu0 %v654
  %v656 = vpop.xlane.xlu0 %655
  %v657 = vsel %vm206, %v164, 0.0
  %658 = vadd.xlane.f32.xlu0 %v657
  %v659 = vpop.xlane.xlu0 %658
  %v660 = vsel %vm206, %v165, 0.0
  %661 = vadd.xlane.f32.xlu0 %v660
  %v662 = vpop.xlane.xlu0 %661
  %v663 = vsel %vm206, %v166, 0.0
  %664 = vadd.xlane.f32.xlu0 %v663
  %v665 = vpop.xlane.xlu0 %664
  %v666 = vsel %vm206, %v167, 0.0
  %667 = vadd.xlane.f32.xlu0 %v666
  %v668 = vpop.xlane.xlu0 %667
  %v669 = vsel %vm206, %v168, 0.0
  %670 = vadd.xlane.f32.xlu0 %v669
  %v671 = vpop.xlane.xlu0 %670
  %v672 = vsel %vm206, %v169, 0.0
  %673 = vadd.xlane.f32.xlu0 %v672
  %v674 = vpop.xlane.xlu0 %673
  %v675 = vsel %vm206, %v170, 0.0
  %676 = vadd.xlane.f32.xlu0 %v675
  %v677 = vpop.xlane.xlu0 %676
  %v678 = vsel %vm206, %v171, 0.0
  %679 = vadd.xlane.f32.xlu0 %v678
  %v680 = vpop.xlane.xlu0 %679
  %v681 = vsel %vm206, %v172, 0.0
  %682 = vadd.xlane.f32.xlu0 %v681
  %v683 = vpop.xlane.xlu0 %682
  %v684 = vsel %vm206, %v173, 0.0
  %685 = vadd.xlane.f32.xlu0 %v684
  %v686 = vpop.xlane.xlu0 %685
  %v687 = vsel %vm206, %v174, 0.0
  %688 = vadd.xlane.f32.xlu0 %v687
  %v689 = vpop.xlane.xlu0 %688
  %v690 = vsel %vm206, %v175, 0.0
  %691 = vadd.xlane.f32.xlu0 %v690
  %v692 = vpop.xlane.xlu0 %691
  %v693 = vsel %vm206, %v176, 0.0
  %694 = vadd.xlane.f32.xlu0 %v693
  %v695 = vpop.xlane.xlu0 %694
  %v696 = vsel %vm206, %v177, 0.0
  %697 = vadd.xlane.f32.xlu0 %v696
  %v698 = vpop.xlane.xlu0 %697
  %v699 = vsel %vm206, %v178, 0.0
  %700 = vadd.xlane.f32.xlu0 %v699
  %v701 = vpop.xlane.xlu0 %700
  %v702 = vsel %vm206, %v179, 0.0
  %703 = vadd.xlane.f32.xlu0 %v702
  %v704 = vpop.xlane.xlu0 %703
  %v705 = vsel %vm206, %v180, 0.0
  %706 = vadd.xlane.f32.xlu0 %v705
  %v707 = vpop.xlane.xlu0 %706
  %v708 = vsel %vm206, %v181, 0.0
  %709 = vadd.xlane.f32.xlu0 %v708
  %v710 = vpop.xlane.xlu0 %709
  %v711 = vsel %vm206, %v182, 0.0
  %712 = vadd.xlane.f32.xlu0 %v711
  %v713 = vpop.xlane.xlu0 %712
  %v714 = vsel %vm206, %v183, 0.0
  %715 = vadd.xlane.f32.xlu0 %v714
  %v716 = vpop.xlane.xlu0 %715
  %v717 = vsel %vm206, %v184, 0.0
  %718 = vadd.xlane.f32.xlu0 %v717
  %v719 = vpop.xlane.xlu0 %718
  %v720 = vsel %vm206, %v185, 0.0
  %721 = vadd.xlane.f32.xlu0 %v720
  %v722 = vpop.xlane.xlu0 %721
  %v723 = vsel %vm206, %v186, 0.0
  %724 = vadd.xlane.f32.xlu0 %v723
  %v725 = vpop.xlane.xlu0 %724
  %v726 = vsel %vm206, %v187, 0.0
  %727 = vadd.xlane.f32.xlu0 %v726
  %v728 = vpop.xlane.xlu0 %727
  %v729 = vsel %vm206, %v188, 0.0
  %730 = vadd.xlane.f32.xlu0 %v729
  %v731 = vpop.xlane.xlu0 %730
  %v732 = vsel %vm206, %v189, 0.0
  %733 = vadd.xlane.f32.xlu0 %v732
  %v734 = vpop.xlane.xlu0 %733
  %v735 = vsel %vm206, %v190, 0.0
  %736 = vadd.xlane.f32.xlu0 %v735
  %v737 = vpop.xlane.xlu0 %736
  %v738 = vsel %vm206, %v191, 0.0
  %739 = vadd.xlane.f32.xlu0 %v738
  %v740 = vpop.xlane.xlu0 %739
  %v741 = vsel %vm206, %v192, 0.0
  %742 = vadd.xlane.f32.xlu0 %v741
  %v743 = vpop.xlane.xlu0 %742
  %v744 = vsel %vm206, %v193, 0.0
  %745 = vadd.xlane.f32.xlu0 %v744
  %v746 = vpop.xlane.xlu0 %745
  %v747 = vsel %vm206, %v194, 0.0
  %748 = vadd.xlane.f32.xlu0 %v747
  %v749 = vpop.xlane.xlu0 %748
  %v750 = vsel %vm206, %v195, 0.0
  %751 = vadd.xlane.f32.xlu0 %v750
  %v752 = vpop.xlane.xlu0 %751
  %v753 = vsel %vm206, %v196, 0.0
  %754 = vadd.xlane.f32.xlu0 %v753
  %v755 = vpop.xlane.xlu0 %754
  %v756 = vsel %vm206, %v197, 0.0
  %757 = vadd.xlane.f32.xlu0 %v756
  %v758 = vpop.xlane.xlu0 %757
  %v759 = vsel %vm206, %v198, 0.0
  %760 = vadd.xlane.f32.xlu0 %v759
  %v761 = vpop.xlane.xlu0 %760
  %v762 = vsel %vm206, %v199, 0.0
  %763 = vadd.xlane.f32.xlu0 %v762
  %v764 = vpop.xlane.xlu0 %763
  %v765 = vsel %vm206, %v200, 0.0
  %766 = vadd.xlane.f32.xlu0 %v765
  %v767 = vpop.xlane.xlu0 %766
  %v768 = vsel %vm206, %v201, 0.0
  %769 = vadd.xlane.f32.xlu0 %v768
  %v770 = vpop.xlane.xlu0 %769
  %v771 = vsel %vm206, %v202, 0.0
  %772 = vadd.xlane.f32.xlu0 %v771
  %v773 = vpop.xlane.xlu0 %772
  %v774 = vsel %vm206, %v203, 0.0
  %775 = vadd.xlane.f32.xlu0 %v774
  %v776 = vpop.xlane.xlu0 %775
  %v777 = vsel %vm206, %v204, 0.0
  %778 = vadd.xlane.f32.xlu0 %v777
  %v779 = vpop.xlane.xlu0 %778
  %v780 = vsel %vm206, %v205, 0.0
  %781 = vadd.xlane.f32.xlu0 %v780
  %v782 = vpop.xlane.xlu0 %781
  %v783 = vmul.f32 %v209, 0.020408163
  %v784 = vmul.f32 %v212, 0.020408163
  %v785 = vmul.f32 %v215, 0.020408163
  %v786 = vmul.f32 %v218, 0.020408163
  %v787 = vmul.f32 %v221, 0.020408163
  %v788 = vmul.f32 %v224, 0.020408163
  %v789 = vmul.f32 %v227, 0.020408163
  %v790 = vmul.f32 %v230, 0.020408163
  %v791 = vmul.f32 %v233, 0.020408163
  %v792 = vmul.f32 %v236, 0.020408163
  %v793 = vmul.f32 %v239, 0.020408163
  %v794 = vmul.f32 %v242, 0.020408163
  %v795 = vmul.f32 %v245, 0.020408163
  %v796 = vmul.f32 %v248, 0.020408163
  %v797 = vmul.f32 %v251, 0.020408163
  %v798 = vmul.f32 %v254, 0.020408163
  %v799 = vmul.f32 %v257, 0.020408163
  %v800 = vmul.f32 %v260, 0.020408163
  %v801 = vmul.f32 %v263, 0.020408163
  %v802 = vmul.f32 %v266, 0.020408163
  %v803 = vmul.f32 %v269, 0.020408163
  %v804 = vmul.f32 %v272, 0.020408163
  %v805 = vmul.f32 %v275, 0.020408163
  %v806 = vmul.f32 %v278, 0.020408163
  %v807 = vmul.f32 %v281, 0.020408163
  %v808 = vmul.f32 %v284, 0.020408163
  %v809 = vmul.f32 %v287, 0.020408163
  %v810 = vmul.f32 %v290, 0.020408163
  %v811 = vmul.f32 %v293, 0.020408163
  %v812 = vmul.f32 %v296, 0.020408163
  %v813 = vmul.f32 %v299, 0.020408163
  %v814 = vmul.f32 %v302, 0.020408163
  %v815 = vmul.f32 %v305, 0.020408163
  %v816 = vmul.f32 %v308, 0.020408163
  %v817 = vmul.f32 %v311, 0.020408163
  %v818 = vmul.f32 %v314, 0.020408163
  %v819 = vmul.f32 %v317, 0.020408163
  %v820 = vmul.f32 %v320, 0.020408163
  %v821 = vmul.f32 %v323, 0.020408163
  %v822 = vmul.f32 %v326, 0.020408163
  %v823 = vmul.f32 %v329, 0.020408163
  %v824 = vmul.f32 %v332, 0.020408163
  %v825 = vmul.f32 %v335, 0.020408163
  %v826 = vmul.f32 %v338, 0.020408163
  %v827 = vmul.f32 %v341, 0.020408163
  %v828 = vmul.f32 %v344, 0.020408163
  %v829 = vmul.f32 %v347, 0.020408163
  %v830 = vmul.f32 %v350, 0.020408163
  %v831 = vmul.f32 %v353, 0.020408163
  %v832 = vmul.f32 %v356, 0.020408163
  %v833 = vmul.f32 %v359, 0.020408163
  %v834 = vmul.f32 %v362, 0.020408163
  %v835 = vmul.f32 %v365, 0.020408163
  %v836 = vmul.f32 %v368, 0.020408163
  %v837 = vmul.f32 %v371, 0.020408163
  %v838 = vmul.f32 %v374, 0.020408163
  %v839 = vmul.f32 %v377, 0.020408163
  %v840 = vmul.f32 %v380, 0.020408163
  %v841 = vmul.f32 %v383, 0.020408163
  %v842 = vmul.f32 %v386, 0.020408163
  %v843 = vmul.f32 %v389, 0.020408163
  %v844 = vmul.f32 %v392, 0.020408163
  %v845 = vmul.f32 %v395, 0.020408163
  %v846 = vmul.f32 %v398, 0.020408163
  %v847 = vmul.f32 %v401, 0.020408163
  %v848 = vmul.f32 %v404, 0.020408163
  %v849 = vmul.f32 %v407, 0.020408163
  %v850 = vmul.f32 %v410, 0.020408163
  %v851 = vmul.f32 %v413, 0.020408163
  %v852 = vmul.f32 %v416, 0.020408163
  %v853 = vmul.f32 %v419, 0.020408163
  %v854 = vmul.f32 %v422, 0.020408163
  %v855 = vmul.f32 %v425, 0.020408163
  %v856 = vmul.f32 %v428, 0.020408163
  %v857 = vmul.f32 %v431, 0.020408163
  %v858 = vmul.f32 %v434, 0.020408163
  %v859 = vmul.f32 %v437, 0.020408163
  %v860 = vmul.f32 %v440, 0.020408163
  %v861 = vmul.f32 %v443, 0.020408163
  %v862 = vmul.f32 %v446, 0.020408163
  %v863 = vmul.f32 %v449, 0.020408163
  %v864 = vmul.f32 %v452, 0.020408163
  %v865 = vmul.f32 %v455, 0.020408163
  %v866 = vmul.f32 %v458, 0.020408163
  %v867 = vmul.f32 %v461, 0.020408163
  %v868 = vmul.f32 %v464, 0.020408163
  %v869 = vmul.f32 %v467, 0.020408163
  %v870 = vmul.f32 %v470, 0.020408163
  %v871 = vmul.f32 %v473, 0.020408163
  %v872 = vmul.f32 %v476, 0.020408163
  %v873 = vmul.f32 %v479, 0.020408163
  %v874 = vmul.f32 %v482, 0.020408163
  %v875 = vmul.f32 %v485, 0.020408163
  %v876 = vmul.f32 %v488, 0.020408163
  %v877 = vmul.f32 %v491, 0.020408163
  %v878 = vmul.f32 %v494, 0.020408163
  %v879 = vmul.f32 %v497, 0.020408163
  %v880 = vmul.f32 %v500, 0.020408163
  %v881 = vmul.f32 %v503, 0.020408163
  %v882 = vmul.f32 %v506, 0.020408163
  %v883 = vmul.f32 %v509, 0.020408163
  %v884 = vmul.f32 %v512, 0.020408163
  %v885 = vmul.f32 %v515, 0.020408163
  %v886 = vmul.f32 %v518, 0.020408163
  %v887 = vmul.f32 %v521, 0.020408163
  %v888 = vmul.f32 %v524, 0.020408163
  %v889 = vmul.f32 %v527, 0.020408163
  %v890 = vmul.f32 %v530, 0.020408163
  %v891 = vmul.f32 %v533, 0.020408163
  %v892 = vmul.f32 %v536, 0.020408163
  %v893 = vmul.f32 %v539, 0.020408163
  %v894 = vmul.f32 %v542, 0.020408163
  %v895 = vmul.f32 %v545, 0.020408163
  %v896 = vmul.f32 %v548, 0.020408163
  %v897 = vmul.f32 %v551, 0.020408163
  %v898 = vmul.f32 %v554, 0.020408163
  %v899 = vmul.f32 %v557, 0.020408163
  %v900 = vmul.f32 %v560, 0.020408163
  %v901 = vmul.f32 %v563, 0.020408163
  %v902 = vmul.f32 %v566, 0.020408163
  %v903 = vmul.f32 %v569, 0.020408163
  %v904 = vmul.f32 %v572, 0.020408163
  %v905 = vmul.f32 %v575, 0.020408163
  %v906 = vmul.f32 %v578, 0.020408163
  %v907 = vmul.f32 %v581, 0.020408163
  %v908 = vmul.f32 %v584, 0.020408163
  %v909 = vmul.f32 %v587, 0.020408163
  %v910 = vmul.f32 %v590, 0.020408163
  %v911 = vmul.f32 %v593, 0.020408163
  %v912 = vmul.f32 %v596, 0.020408163
  %v913 = vmul.f32 %v599, 0.020408163
  %v914 = vmul.f32 %v602, 0.020408163
  %v915 = vmul.f32 %v605, 0.020408163
  %v916 = vmul.f32 %v608, 0.020408163
  %v917 = vmul.f32 %v611, 0.020408163
  %v918 = vmul.f32 %v614, 0.020408163
  %v919 = vmul.f32 %v617, 0.020408163
  %v920 = vmul.f32 %v620, 0.020408163
  %v921 = vmul.f32 %v623, 0.020408163
  %v922 = vmul.f32 %v626, 0.020408163
  %v923 = vmul.f32 %v629, 0.020408163
  %v924 = vmul.f32 %v632, 0.020408163
  %v925 = vmul.f32 %v635, 0.020408163
  %v926 = vmul.f32 %v638, 0.020408163
  %v927 = vmul.f32 %v641, 0.020408163
  %v928 = vmul.f32 %v644, 0.020408163
  %v929 = vmul.f32 %v647, 0.020408163
  %v930 = vmul.f32 %v650, 0.020408163
  %v931 = vmul.f32 %v653, 0.020408163
  %v932 = vmul.f32 %v656, 0.020408163
  %v933 = vmul.f32 %v659, 0.020408163
  %v934 = vmul.f32 %v662, 0.020408163
  %v935 = vmul.f32 %v665, 0.020408163
  %v936 = vmul.f32 %v668, 0.020408163
  %v937 = vmul.f32 %v671, 0.020408163
  %v938 = vmul.f32 %v674, 0.020408163
  %v939 = vmul.f32 %v677, 0.020408163
  %v940 = vmul.f32 %v680, 0.020408163
  %v941 = vmul.f32 %v683, 0.020408163
  %v942 = vmul.f32 %v686, 0.020408163
  %v943 = vmul.f32 %v689, 0.020408163
  %v944 = vmul.f32 %v692, 0.020408163
  %v945 = vmul.f32 %v695, 0.020408163
  %v946 = vmul.f32 %v698, 0.020408163
  %v947 = vmul.f32 %v701, 0.020408163
  %v948 = vmul.f32 %v704, 0.020408163
  %v949 = vmul.f32 %v707, 0.020408163
  %v950 = vmul.f32 %v710, 0.020408163
  %v951 = vmul.f32 %v713, 0.020408163
  %v952 = vmul.f32 %v716, 0.020408163
  %v953 = vmul.f32 %v719, 0.020408163
  %v954 = vmul.f32 %v722, 0.020408163
  %v955 = vmul.f32 %v725, 0.020408163
  %v956 = vmul.f32 %v728, 0.020408163
  %v957 = vmul.f32 %v731, 0.020408163
  %v958 = vmul.f32 %v734, 0.020408163
  %v959 = vmul.f32 %v737, 0.020408163
  %v960 = vmul.f32 %v740, 0.020408163
  %v961 = vmul.f32 %v743, 0.020408163
  %v962 = vmul.f32 %v746, 0.020408163
  %v963 = vmul.f32 %v749, 0.020408163
  %v964 = vmul.f32 %v752, 0.020408163
  %v965 = vmul.f32 %v755, 0.020408163
  %v966 = vmul.f32 %v758, 0.020408163
  %v967 = vmul.f32 %v761, 0.020408163
  %v968 = vmul.f32 %v764, 0.020408163
  %v969 = vmul.f32 %v767, 0.020408163
  %v970 = vmul.f32 %v770, 0.020408163
  %v971 = vmul.f32 %v773, 0.020408163
  %v972 = vmul.f32 %v776, 0.020408163
  %v973 = vmul.f32 %v779, 0.020408163
  %v974 = vmul.f32 %v782, 0.020408163
  %v975 = vld [vmem:[%s1] sm:$0xff]
  %v976 = vld [vmem:[%s1 + $0x8] sm:$0xff]
  %v977 = vld [vmem:[%s1 + $0x10] sm:$0xff]
  %v978 = vld [vmem:[%s1 + $0x18] sm:$0xff]
  %v979 = vld [vmem:[%s1 + $0x20] sm:$0xff]
  %v980 = vld [vmem:[%s1 + $0x28] sm:$0xff]
  %v981 = vld [vmem:[%s1 + $0x30] sm:$0xff]
  %v982 = vld [vmem:[%s1 + $0x38] sm:$0xff]
  %v983 = vld [vmem:[%s1 + $0x40] sm:$0xff]
  %v984 = vld [vmem:[%s1 + $0x48] sm:$0xff]
  %v985 = vld [vmem:[%s1 + $0x50] sm:$0xff]
  %v986 = vld [vmem:[%s1 + $0x58] sm:$0xff]
  %v1179 = vlaneseq
  %v1180 = vand.u32 %v1179, 127
  %v1181 = vlaneseq
  %v1182 = vshrl.u32 %v1181, 7
  %v1183 = vsub.s32 %v1180, %v1182
  %v1184 = vrot.slane %v783, %v1183
  %v1185 = vadd.s32 %v1180, 4294967288
  %v1186 = vlaneseq
  %v1187 = vshrl.u32 %v1186, 7
  %v1188 = vsub.s32 %v1185, %v1187
  %v1189 = vrot.slane %v784, %v1188
  %vm1190 = vcmask 130112
  %v1191 = vsel %vm1190, %v1189, %v1184
  %v1192 = vadd.s32 %v1180, 4294967280
  %v1193 = vlaneseq
  %v1194 = vshrl.u32 %v1193, 7
  %v1195 = vsub.s32 %v1192, %v1194
  %v1196 = vrot.slane %v785, %v1195
  %vm1197 = vcmask 195712
  %v1198 = vsel %vm1197, %v1196, %v1191
  %v1199 = vadd.s32 %v1180, 4294967272
  %v1200 = vlaneseq
  %v1201 = vshrl.u32 %v1200, 7
  %v1202 = vsub.s32 %v1199, %v1201
  %v1203 = vrot.slane %v786, %v1202
  %vm1204 = vcmask 261312
  %v1205 = vsel %vm1204, %v1203, %v1198
  %v1206 = vadd.s32 %v1180, 4294967264
  %v1207 = vlaneseq
  %v1208 = vshrl.u32 %v1207, 7
  %v1209 = vsub.s32 %v1206, %v1208
  %v1210 = vrot.slane %v787, %v1209
  %vm1211 = vcmask 326912
  %v1212 = vsel %vm1211, %v1210, %v1205
  %v1213 = vadd.s32 %v1180, 4294967256
  %v1214 = vlaneseq
  %v1215 = vshrl.u32 %v1214, 7
  %v1216 = vsub.s32 %v1213, %v1215
  %v1217 = vrot.slane %v788, %v1216
  %vm1218 = vcmask 392512
  %v1219 = vsel %vm1218, %v1217, %v1212
  %v1220 = vadd.s32 %v1180, 4294967248
  %v1221 = vlaneseq
  %v1222 = vshrl.u32 %v1221, 7
  %v1223 = vsub.s32 %v1220, %v1222
  %v1224 = vrot.slane %v789, %v1223
  %vm1225 = vcmask 458112
  %v1226 = vsel %vm1225, %v1224, %v1219
  %v1227 = vadd.s32 %v1180, 4294967240
  %v1228 = vlaneseq
  %v1229 = vshrl.u32 %v1228, 7
  %v1230 = vsub.s32 %v1227, %v1229
  %v1231 = vrot.slane %v790, %v1230
  %vm1232 = vcmask 523712
  %v1233 = vsel %vm1232, %v1231, %v1226
  %v1234 = vadd.s32 %v1180, 4294967232
  %v1235 = vlaneseq
  %v1236 = vshrl.u32 %v1235, 7
  %v1237 = vsub.s32 %v1234, %v1236
  %v1238 = vrot.slane %v791, %v1237
  %vm1239 = vcmask 589312
  %v1240 = vsel %vm1239, %v1238, %v1233
  %v1241 = vadd.s32 %v1180, 4294967224
  %v1242 = vlaneseq
  %v1243 = vshrl.u32 %v1242, 7
  %v1244 = vsub.s32 %v1241, %v1243
  %v1245 = vrot.slane %v792, %v1244
  %vm1246 = vcmask 654912
  %v1247 = vsel %vm1246, %v1245, %v1240
  %v1248 = vadd.s32 %v1180, 4294967216
  %v1249 = vlaneseq
  %v1250 = vshrl.u32 %v1249, 7
  %v1251 = vsub.s32 %v1248, %v1250
  %v1252 = vrot.slane %v793, %v1251
  %vm1253 = vcmask 720512
  %v1254 = vsel %vm1253, %v1252, %v1247
  %v1255 = vadd.s32 %v1180, 4294967208
  %v1256 = vlaneseq
  %v1257 = vshrl.u32 %v1256, 7
  %v1258 = vsub.s32 %v1255, %v1257
  %v1259 = vrot.slane %v794, %v1258
  %vm1260 = vcmask 786112
  %v1261 = vsel %vm1260, %v1259, %v1254
  %v1262 = vlaneseq
  %v1263 = vshrl.u32 %v1262, 7
  %v1264 = vsub.s32 %v1180, %v1263
  %v1265 = vrot.slane %v795, %v1264
  %v1266 = vlaneseq
  %v1267 = vshrl.u32 %v1266, 7
  %v1268 = vsub.s32 %v1185, %v1267
  %v1269 = vrot.slane %v796, %v1268
  %v1270 = vsel %vm1190, %v1269, %v1265
  %v1271 = vlaneseq
  %v1272 = vshrl.u32 %v1271, 7
  %v1273 = vsub.s32 %v1192, %v1272
  %v1274 = vrot.slane %v797, %v1273
  %v1275 = vsel %vm1197, %v1274, %v1270
  %v1276 = vlaneseq
  %v1277 = vshrl.u32 %v1276, 7
  %v1278 = vsub.s32 %v1199, %v1277
  %v1279 = vrot.slane %v798, %v1278
  %v1280 = vsel %vm1204, %v1279, %v1275
  %v1281 = vlaneseq
  %v1282 = vshrl.u32 %v1281, 7
  %v1283 = vsub.s32 %v1206, %v1282
  %v1284 = vrot.slane %v799, %v1283
  %v1285 = vsel %vm1211, %v1284, %v1280
  %v1286 = vlaneseq
  %v1287 = vshrl.u32 %v1286, 7
  %v1288 = vsub.s32 %v1213, %v1287
  %v1289 = vrot.slane %v800, %v1288
  %v1290 = vsel %vm1218, %v1289, %v1285
  %v1291 = vlaneseq
  %v1292 = vshrl.u32 %v1291, 7
  %v1293 = vsub.s32 %v1220, %v1292
  %v1294 = vrot.slane %v801, %v1293
  %v1295 = vsel %vm1225, %v1294, %v1290
  %v1296 = vlaneseq
  %v1297 = vshrl.u32 %v1296, 7
  %v1298 = vsub.s32 %v1227, %v1297
  %v1299 = vrot.slane %v802, %v1298
  %v1300 = vsel %vm1232, %v1299, %v1295
  %v1301 = vlaneseq
  %v1302 = vshrl.u32 %v1301, 7
  %v1303 = vsub.s32 %v1234, %v1302
  %v1304 = vrot.slane %v803, %v1303
  %v1305 = vsel %vm1239, %v1304, %v1300
  %v1306 = vlaneseq
  %v1307 = vshrl.u32 %v1306, 7
  %v1308 = vsub.s32 %v1241, %v1307
  %v1309 = vrot.slane %v804, %v1308
  %v1310 = vsel %vm1246, %v1309, %v1305
  %v1311 = vlaneseq
  %v1312 = vshrl.u32 %v1311, 7
  %v1313 = vsub.s32 %v1248, %v1312
  %v1314 = vrot.slane %v805, %v1313
  %v1315 = vsel %vm1253, %v1314, %v1310
  %v1316 = vlaneseq
  %v1317 = vshrl.u32 %v1316, 7
  %v1318 = vsub.s32 %v1255, %v1317
  %v1319 = vrot.slane %v806, %v1318
  %v1320 = vsel %vm1260, %v1319, %v1315
  %v1321 = vlaneseq
  %v1322 = vshrl.u32 %v1321, 7
  %v1323 = vsub.s32 %v1180, %v1322
  %v1324 = vrot.slane %v807, %v1323
  %v1325 = vlaneseq
  %v1326 = vshrl.u32 %v1325, 7
  %v1327 = vsub.s32 %v1185, %v1326
  %v1328 = vrot.slane %v808, %v1327
  %v1329 = vsel %vm1190, %v1328, %v1324
  %v1330 = vlaneseq
  %v1331 = vshrl.u32 %v1330, 7
  %v1332 = vsub.s32 %v1192, %v1331
  %v1333 = vrot.slane %v809, %v1332
  %v1334 = vsel %vm1197, %v1333, %v1329
  %v1335 = vlaneseq
  %v1336 = vshrl.u32 %v1335, 7
  %v1337 = vsub.s32 %v1199, %v1336
  %v1338 = vrot.slane %v810, %v1337
  %v1339 = vsel %vm1204, %v1338, %v1334
  %v1340 = vlaneseq
  %v1341 = vshrl.u32 %v1340, 7
  %v1342 = vsub.s32 %v1206, %v1341
  %v1343 = vrot.slane %v811, %v1342
  %v1344 = vsel %vm1211, %v1343, %v1339
  %v1345 = vlaneseq
  %v1346 = vshrl.u32 %v1345, 7
  %v1347 = vsub.s32 %v1213, %v1346
  %v1348 = vrot.slane %v812, %v1347
  %v1349 = vsel %vm1218, %v1348, %v1344
  %v1350 = vlaneseq
  %v1351 = vshrl.u32 %v1350, 7
  %v1352 = vsub.s32 %v1220, %v1351
  %v1353 = vrot.slane %v813, %v1352
  %v1354 = vsel %vm1225, %v1353, %v1349
  %v1355 = vlaneseq
  %v1356 = vshrl.u32 %v1355, 7
  %v1357 = vsub.s32 %v1227, %v1356
  %v1358 = vrot.slane %v814, %v1357
  %v1359 = vsel %vm1232, %v1358, %v1354
  %v1360 = vlaneseq
  %v1361 = vshrl.u32 %v1360, 7
  %v1362 = vsub.s32 %v1234, %v1361
  %v1363 = vrot.slane %v815, %v1362
  %v1364 = vsel %vm1239, %v1363, %v1359
  %v1365 = vlaneseq
  %v1366 = vshrl.u32 %v1365, 7
  %v1367 = vsub.s32 %v1241, %v1366
  %v1368 = vrot.slane %v816, %v1367
  %v1369 = vsel %vm1246, %v1368, %v1364
  %v1370 = vlaneseq
  %v1371 = vshrl.u32 %v1370, 7
  %v1372 = vsub.s32 %v1248, %v1371
  %v1373 = vrot.slane %v817, %v1372
  %v1374 = vsel %vm1253, %v1373, %v1369
  %v1375 = vlaneseq
  %v1376 = vshrl.u32 %v1375, 7
  %v1377 = vsub.s32 %v1255, %v1376
  %v1378 = vrot.slane %v818, %v1377
  %v1379 = vsel %vm1260, %v1378, %v1374
  %v1380 = vlaneseq
  %v1381 = vshrl.u32 %v1380, 7
  %v1382 = vsub.s32 %v1180, %v1381
  %v1383 = vrot.slane %v819, %v1382
  %v1384 = vlaneseq
  %v1385 = vshrl.u32 %v1384, 7
  %v1386 = vsub.s32 %v1185, %v1385
  %v1387 = vrot.slane %v820, %v1386
  %v1388 = vsel %vm1190, %v1387, %v1383
  %v1389 = vlaneseq
  %v1390 = vshrl.u32 %v1389, 7
  %v1391 = vsub.s32 %v1192, %v1390
  %v1392 = vrot.slane %v821, %v1391
  %v1393 = vsel %vm1197, %v1392, %v1388
  %v1394 = vlaneseq
  %v1395 = vshrl.u32 %v1394, 7
  %v1396 = vsub.s32 %v1199, %v1395
  %v1397 = vrot.slane %v822, %v1396
  %v1398 = vsel %vm1204, %v1397, %v1393
  %v1399 = vlaneseq
  %v1400 = vshrl.u32 %v1399, 7
  %v1401 = vsub.s32 %v1206, %v1400
  %v1402 = vrot.slane %v823, %v1401
  %v1403 = vsel %vm1211, %v1402, %v1398
  %v1404 = vlaneseq
  %v1405 = vshrl.u32 %v1404, 7
  %v1406 = vsub.s32 %v1213, %v1405
  %v1407 = vrot.slane %v824, %v1406
  %v1408 = vsel %vm1218, %v1407, %v1403
  %v1409 = vlaneseq
  %v1410 = vshrl.u32 %v1409, 7
  %v1411 = vsub.s32 %v1220, %v1410
  %v1412 = vrot.slane %v825, %v1411
  %v1413 = vsel %vm1225, %v1412, %v1408
  %v1414 = vlaneseq
  %v1415 = vshrl.u32 %v1414, 7
  %v1416 = vsub.s32 %v1227, %v1415
  %v1417 = vrot.slane %v826, %v1416
  %v1418 = vsel %vm1232, %v1417, %v1413
  %v1419 = vlaneseq
  %v1420 = vshrl.u32 %v1419, 7
  %v1421 = vsub.s32 %v1234, %v1420
  %v1422 = vrot.slane %v827, %v1421
  %v1423 = vsel %vm1239, %v1422, %v1418
  %v1424 = vlaneseq
  %v1425 = vshrl.u32 %v1424, 7
  %v1426 = vsub.s32 %v1241, %v1425
  %v1427 = vrot.slane %v828, %v1426
  %v1428 = vsel %vm1246, %v1427, %v1423
  %v1429 = vlaneseq
  %v1430 = vshrl.u32 %v1429, 7
  %v1431 = vsub.s32 %v1248, %v1430
  %v1432 = vrot.slane %v829, %v1431
  %v1433 = vsel %vm1253, %v1432, %v1428
  %v1434 = vlaneseq
  %v1435 = vshrl.u32 %v1434, 7
  %v1436 = vsub.s32 %v1255, %v1435
  %v1437 = vrot.slane %v830, %v1436
  %v1438 = vsel %vm1260, %v1437, %v1433
  %v1439 = vlaneseq
  %v1440 = vshrl.u32 %v1439, 7
  %v1441 = vsub.s32 %v1180, %v1440
  %v1442 = vrot.slane %v831, %v1441
  %v1443 = vlaneseq
  %v1444 = vshrl.u32 %v1443, 7
  %v1445 = vsub.s32 %v1185, %v1444
  %v1446 = vrot.slane %v832, %v1445
  %v1447 = vsel %vm1190, %v1446, %v1442
  %v1448 = vlaneseq
  %v1449 = vshrl.u32 %v1448, 7
  %v1450 = vsub.s32 %v1192, %v1449
  %v1451 = vrot.slane %v833, %v1450
  %v1452 = vsel %vm1197, %v1451, %v1447
  %v1453 = vlaneseq
  %v1454 = vshrl.u32 %v1453, 7
  %v1455 = vsub.s32 %v1199, %v1454
  %v1456 = vrot.slane %v834, %v1455
  %v1457 = vsel %vm1204, %v1456, %v1452
  %v1458 = vlaneseq
  %v1459 = vshrl.u32 %v1458, 7
  %v1460 = vsub.s32 %v1206, %v1459
  %v1461 = vrot.slane %v835, %v1460
  %v1462 = vsel %vm1211, %v1461, %v1457
  %v1463 = vlaneseq
  %v1464 = vshrl.u32 %v1463, 7
  %v1465 = vsub.s32 %v1213, %v1464
  %v1466 = vrot.slane %v836, %v1465
  %v1467 = vsel %vm1218, %v1466, %v1462
  %v1468 = vlaneseq
  %v1469 = vshrl.u32 %v1468, 7
  %v1470 = vsub.s32 %v1220, %v1469
  %v1471 = vrot.slane %v837, %v1470
  %v1472 = vsel %vm1225, %v1471, %v1467
  %v1473 = vlaneseq
  %v1474 = vshrl.u32 %v1473, 7
  %v1475 = vsub.s32 %v1227, %v1474
  %v1476 = vrot.slane %v838, %v1475
  %v1477 = vsel %vm1232, %v1476, %v1472
  %v1478 = vlaneseq
  %v1479 = vshrl.u32 %v1478, 7
  %v1480 = vsub.s32 %v1234, %v1479
  %v1481 = vrot.slane %v839, %v1480
  %v1482 = vsel %vm1239, %v1481, %v1477
  %v1483 = vlaneseq
  %v1484 = vshrl.u32 %v1483, 7
  %v1485 = vsub.s32 %v1241, %v1484
  %v1486 = vrot.slane %v840, %v1485
  %v1487 = vsel %vm1246, %v1486, %v1482
  %v1488 = vlaneseq
  %v1489 = vshrl.u32 %v1488, 7
  %v1490 = vsub.s32 %v1248, %v1489
  %v1491 = vrot.slane %v841, %v1490
  %v1492 = vsel %vm1253, %v1491, %v1487
  %v1493 = vlaneseq
  %v1494 = vshrl.u32 %v1493, 7
  %v1495 = vsub.s32 %v1255, %v1494
  %v1496 = vrot.slane %v842, %v1495
  %v1497 = vsel %vm1260, %v1496, %v1492
  %v1498 = vlaneseq
  %v1499 = vshrl.u32 %v1498, 7
  %v1500 = vsub.s32 %v1180, %v1499
  %v1501 = vrot.slane %v843, %v1500
  %v1502 = vlaneseq
  %v1503 = vshrl.u32 %v1502, 7
  %v1504 = vsub.s32 %v1185, %v1503
  %v1505 = vrot.slane %v844, %v1504
  %v1506 = vsel %vm1190, %v1505, %v1501
  %v1507 = vlaneseq
  %v1508 = vshrl.u32 %v1507, 7
  %v1509 = vsub.s32 %v1192, %v1508
  %v1510 = vrot.slane %v845, %v1509
  %v1511 = vsel %vm1197, %v1510, %v1506
  %v1512 = vlaneseq
  %v1513 = vshrl.u32 %v1512, 7
  %v1514 = vsub.s32 %v1199, %v1513
  %v1515 = vrot.slane %v846, %v1514
  %v1516 = vsel %vm1204, %v1515, %v1511
  %v1517 = vlaneseq
  %v1518 = vshrl.u32 %v1517, 7
  %v1519 = vsub.s32 %v1206, %v1518
  %v1520 = vrot.slane %v847, %v1519
  %v1521 = vsel %vm1211, %v1520, %v1516
  %v1522 = vlaneseq
  %v1523 = vshrl.u32 %v1522, 7
  %v1524 = vsub.s32 %v1213, %v1523
  %v1525 = vrot.slane %v848, %v1524
  %v1526 = vsel %vm1218, %v1525, %v1521
  %v1527 = vlaneseq
  %v1528 = vshrl.u32 %v1527, 7
  %v1529 = vsub.s32 %v1220, %v1528
  %v1530 = vrot.slane %v849, %v1529
  %v1531 = vsel %vm1225, %v1530, %v1526
  %v1532 = vlaneseq
  %v1533 = vshrl.u32 %v1532, 7
  %v1534 = vsub.s32 %v1227, %v1533
  %v1535 = vrot.slane %v850, %v1534
  %v1536 = vsel %vm1232, %v1535, %v1531
  %v1537 = vlaneseq
  %v1538 = vshrl.u32 %v1537, 7
  %v1539 = vsub.s32 %v1234, %v1538
  %v1540 = vrot.slane %v851, %v1539
  %v1541 = vsel %vm1239, %v1540, %v1536
  %v1542 = vlaneseq
  %v1543 = vshrl.u32 %v1542, 7
  %v1544 = vsub.s32 %v1241, %v1543
  %v1545 = vrot.slane %v852, %v1544
  %v1546 = vsel %vm1246, %v1545, %v1541
  %v1547 = vlaneseq
  %v1548 = vshrl.u32 %v1547, 7
  %v1549 = vsub.s32 %v1248, %v1548
  %v1550 = vrot.slane %v853, %v1549
  %v1551 = vsel %vm1253, %v1550, %v1546
  %v1552 = vlaneseq
  %v1553 = vshrl.u32 %v1552, 7
  %v1554 = vsub.s32 %v1255, %v1553
  %v1555 = vrot.slane %v854, %v1554
  %v1556 = vsel %vm1260, %v1555, %v1551
  %v1557 = vlaneseq
  %v1558 = vshrl.u32 %v1557, 7
  %v1559 = vsub.s32 %v1180, %v1558
  %v1560 = vrot.slane %v855, %v1559
  %v1561 = vlaneseq
  %v1562 = vshrl.u32 %v1561, 7
  %v1563 = vsub.s32 %v1185, %v1562
  %v1564 = vrot.slane %v856, %v1563
  %v1565 = vsel %vm1190, %v1564, %v1560
  %v1566 = vlaneseq
  %v1567 = vshrl.u32 %v1566, 7
  %v1568 = vsub.s32 %v1192, %v1567
  %v1569 = vrot.slane %v857, %v1568
  %v1570 = vsel %vm1197, %v1569, %v1565
  %v1571 = vlaneseq
  %v1572 = vshrl.u32 %v1571, 7
  %v1573 = vsub.s32 %v1199, %v1572
  %v1574 = vrot.slane %v858, %v1573
  %v1575 = vsel %vm1204, %v1574, %v1570
  %v1576 = vlaneseq
  %v1577 = vshrl.u32 %v1576, 7
  %v1578 = vsub.s32 %v1206, %v1577
  %v1579 = vrot.slane %v859, %v1578
  %v1580 = vsel %vm1211, %v1579, %v1575
  %v1581 = vlaneseq
  %v1582 = vshrl.u32 %v1581, 7
  %v1583 = vsub.s32 %v1213, %v1582
  %v1584 = vrot.slane %v860, %v1583
  %v1585 = vsel %vm1218, %v1584, %v1580
  %v1586 = vlaneseq
  %v1587 = vshrl.u32 %v1586, 7
  %v1588 = vsub.s32 %v1220, %v1587
  %v1589 = vrot.slane %v861, %v1588
  %v1590 = vsel %vm1225, %v1589, %v1585
  %v1591 = vlaneseq
  %v1592 = vshrl.u32 %v1591, 7
  %v1593 = vsub.s32 %v1227, %v1592
  %v1594 = vrot.slane %v862, %v1593
  %v1595 = vsel %vm1232, %v1594, %v1590
  %v1596 = vlaneseq
  %v1597 = vshrl.u32 %v1596, 7
  %v1598 = vsub.s32 %v1234, %v1597
  %v1599 = vrot.slane %v863, %v1598
  %v1600 = vsel %vm1239, %v1599, %v1595
  %v1601 = vlaneseq
  %v1602 = vshrl.u32 %v1601, 7
  %v1603 = vsub.s32 %v1241, %v1602
  %v1604 = vrot.slane %v864, %v1603
  %v1605 = vsel %vm1246, %v1604, %v1600
  %v1606 = vlaneseq
  %v1607 = vshrl.u32 %v1606, 7
  %v1608 = vsub.s32 %v1248, %v1607
  %v1609 = vrot.slane %v865, %v1608
  %v1610 = vsel %vm1253, %v1609, %v1605
  %v1611 = vlaneseq
  %v1612 = vshrl.u32 %v1611, 7
  %v1613 = vsub.s32 %v1255, %v1612
  %v1614 = vrot.slane %v866, %v1613
  %v1615 = vsel %vm1260, %v1614, %v1610
  %v1616 = vlaneseq
  %v1617 = vshrl.u32 %v1616, 7
  %v1618 = vsub.s32 %v1180, %v1617
  %v1619 = vrot.slane %v867, %v1618
  %v1620 = vlaneseq
  %v1621 = vshrl.u32 %v1620, 7
  %v1622 = vsub.s32 %v1185, %v1621
  %v1623 = vrot.slane %v868, %v1622
  %v1624 = vsel %vm1190, %v1623, %v1619
  %v1625 = vlaneseq
  %v1626 = vshrl.u32 %v1625, 7
  %v1627 = vsub.s32 %v1192, %v1626
  %v1628 = vrot.slane %v869, %v1627
  %v1629 = vsel %vm1197, %v1628, %v1624
  %v1630 = vlaneseq
  %v1631 = vshrl.u32 %v1630, 7
  %v1632 = vsub.s32 %v1199, %v1631
  %v1633 = vrot.slane %v870, %v1632
  %v1634 = vsel %vm1204, %v1633, %v1629
  %v1635 = vlaneseq
  %v1636 = vshrl.u32 %v1635, 7
  %v1637 = vsub.s32 %v1206, %v1636
  %v1638 = vrot.slane %v871, %v1637
  %v1639 = vsel %vm1211, %v1638, %v1634
  %v1640 = vlaneseq
  %v1641 = vshrl.u32 %v1640, 7
  %v1642 = vsub.s32 %v1213, %v1641
  %v1643 = vrot.slane %v872, %v1642
  %v1644 = vsel %vm1218, %v1643, %v1639
  %v1645 = vlaneseq
  %v1646 = vshrl.u32 %v1645, 7
  %v1647 = vsub.s32 %v1220, %v1646
  %v1648 = vrot.slane %v873, %v1647
  %v1649 = vsel %vm1225, %v1648, %v1644
  %v1650 = vlaneseq
  %v1651 = vshrl.u32 %v1650, 7
  %v1652 = vsub.s32 %v1227, %v1651
  %v1653 = vrot.slane %v874, %v1652
  %v1654 = vsel %vm1232, %v1653, %v1649
  %v1655 = vlaneseq
  %v1656 = vshrl.u32 %v1655, 7
  %v1657 = vsub.s32 %v1234, %v1656
  %v1658 = vrot.slane %v875, %v1657
  %v1659 = vsel %vm1239, %v1658, %v1654
  %v1660 = vlaneseq
  %v1661 = vshrl.u32 %v1660, 7
  %v1662 = vsub.s32 %v1241, %v1661
  %v1663 = vrot.slane %v876, %v1662
  %v1664 = vsel %vm1246, %v1663, %v1659
  %v1665 = vlaneseq
  %v1666 = vshrl.u32 %v1665, 7
  %v1667 = vsub.s32 %v1248, %v1666
  %v1668 = vrot.slane %v877, %v1667
  %v1669 = vsel %vm1253, %v1668, %v1664
  %v1670 = vlaneseq
  %v1671 = vshrl.u32 %v1670, 7
  %v1672 = vsub.s32 %v1255, %v1671
  %v1673 = vrot.slane %v878, %v1672
  %v1674 = vsel %vm1260, %v1673, %v1669
  %v1675 = vlaneseq
  %v1676 = vshrl.u32 %v1675, 7
  %v1677 = vsub.s32 %v1180, %v1676
  %v1678 = vrot.slane %v879, %v1677
  %v1679 = vlaneseq
  %v1680 = vshrl.u32 %v1679, 7
  %v1681 = vsub.s32 %v1185, %v1680
  %v1682 = vrot.slane %v880, %v1681
  %v1683 = vsel %vm1190, %v1682, %v1678
  %v1684 = vlaneseq
  %v1685 = vshrl.u32 %v1684, 7
  %v1686 = vsub.s32 %v1192, %v1685
  %v1687 = vrot.slane %v881, %v1686
  %v1688 = vsel %vm1197, %v1687, %v1683
  %v1689 = vlaneseq
  %v1690 = vshrl.u32 %v1689, 7
  %v1691 = vsub.s32 %v1199, %v1690
  %v1692 = vrot.slane %v882, %v1691
  %v1693 = vsel %vm1204, %v1692, %v1688
  %v1694 = vlaneseq
  %v1695 = vshrl.u32 %v1694, 7
  %v1696 = vsub.s32 %v1206, %v1695
  %v1697 = vrot.slane %v883, %v1696
  %v1698 = vsel %vm1211, %v1697, %v1693
  %v1699 = vlaneseq
  %v1700 = vshrl.u32 %v1699, 7
  %v1701 = vsub.s32 %v1213, %v1700
  %v1702 = vrot.slane %v884, %v1701
  %v1703 = vsel %vm1218, %v1702, %v1698
  %v1704 = vlaneseq
  %v1705 = vshrl.u32 %v1704, 7
  %v1706 = vsub.s32 %v1220, %v1705
  %v1707 = vrot.slane %v885, %v1706
  %v1708 = vsel %vm1225, %v1707, %v1703
  %v1709 = vlaneseq
  %v1710 = vshrl.u32 %v1709, 7
  %v1711 = vsub.s32 %v1227, %v1710
  %v1712 = vrot.slane %v886, %v1711
  %v1713 = vsel %vm1232, %v1712, %v1708
  %v1714 = vlaneseq
  %v1715 = vshrl.u32 %v1714, 7
  %v1716 = vsub.s32 %v1234, %v1715
  %v1717 = vrot.slane %v887, %v1716
  %v1718 = vsel %vm1239, %v1717, %v1713
  %v1719 = vlaneseq
  %v1720 = vshrl.u32 %v1719, 7
  %v1721 = vsub.s32 %v1241, %v1720
  %v1722 = vrot.slane %v888, %v1721
  %v1723 = vsel %vm1246, %v1722, %v1718
  %v1724 = vlaneseq
  %v1725 = vshrl.u32 %v1724, 7
  %v1726 = vsub.s32 %v1248, %v1725
  %v1727 = vrot.slane %v889, %v1726
  %v1728 = vsel %vm1253, %v1727, %v1723
  %v1729 = vlaneseq
  %v1730 = vshrl.u32 %v1729, 7
  %v1731 = vsub.s32 %v1255, %v1730
  %v1732 = vrot.slane %v890, %v1731
  %v1733 = vsel %vm1260, %v1732, %v1728
  %v1734 = vlaneseq
  %v1735 = vshrl.u32 %v1734, 7
  %v1736 = vsub.s32 %v1180, %v1735
  %v1737 = vrot.slane %v891, %v1736
  %v1738 = vlaneseq
  %v1739 = vshrl.u32 %v1738, 7
  %v1740 = vsub.s32 %v1185, %v1739
  %v1741 = vrot.slane %v892, %v1740
  %v1742 = vsel %vm1190, %v1741, %v1737
  %v1743 = vlaneseq
  %v1744 = vshrl.u32 %v1743, 7
  %v1745 = vsub.s32 %v1192, %v1744
  %v1746 = vrot.slane %v893, %v1745
  %v1747 = vsel %vm1197, %v1746, %v1742
  %v1748 = vlaneseq
  %v1749 = vshrl.u32 %v1748, 7
  %v1750 = vsub.s32 %v1199, %v1749
  %v1751 = vrot.slane %v894, %v1750
  %v1752 = vsel %vm1204, %v1751, %v1747
  %v1753 = vlaneseq
  %v1754 = vshrl.u32 %v1753, 7
  %v1755 = vsub.s32 %v1206, %v1754
  %v1756 = vrot.slane %v895, %v1755
  %v1757 = vsel %vm1211, %v1756, %v1752
  %v1758 = vlaneseq
  %v1759 = vshrl.u32 %v1758, 7
  %v1760 = vsub.s32 %v1213, %v1759
  %v1761 = vrot.slane %v896, %v1760
  %v1762 = vsel %vm1218, %v1761, %v1757
  %v1763 = vlaneseq
  %v1764 = vshrl.u32 %v1763, 7
  %v1765 = vsub.s32 %v1220, %v1764
  %v1766 = vrot.slane %v897, %v1765
  %v1767 = vsel %vm1225, %v1766, %v1762
  %v1768 = vlaneseq
  %v1769 = vshrl.u32 %v1768, 7
  %v1770 = vsub.s32 %v1227, %v1769
  %v1771 = vrot.slane %v898, %v1770
  %v1772 = vsel %vm1232, %v1771, %v1767
  %v1773 = vlaneseq
  %v1774 = vshrl.u32 %v1773, 7
  %v1775 = vsub.s32 %v1234, %v1774
  %v1776 = vrot.slane %v899, %v1775
  %v1777 = vsel %vm1239, %v1776, %v1772
  %v1778 = vlaneseq
  %v1779 = vshrl.u32 %v1778, 7
  %v1780 = vsub.s32 %v1241, %v1779
  %v1781 = vrot.slane %v900, %v1780
  %v1782 = vsel %vm1246, %v1781, %v1777
  %v1783 = vlaneseq
  %v1784 = vshrl.u32 %v1783, 7
  %v1785 = vsub.s32 %v1248, %v1784
  %v1786 = vrot.slane %v901, %v1785
  %v1787 = vsel %vm1253, %v1786, %v1782
  %v1788 = vlaneseq
  %v1789 = vshrl.u32 %v1788, 7
  %v1790 = vsub.s32 %v1255, %v1789
  %v1791 = vrot.slane %v902, %v1790
  %v1792 = vsel %vm1260, %v1791, %v1787
  %v1793 = vlaneseq
  %v1794 = vshrl.u32 %v1793, 7
  %v1795 = vsub.s32 %v1180, %v1794
  %v1796 = vrot.slane %v903, %v1795
  %v1797 = vlaneseq
  %v1798 = vshrl.u32 %v1797, 7
  %v1799 = vsub.s32 %v1185, %v1798
  %v1800 = vrot.slane %v904, %v1799
  %v1801 = vsel %vm1190, %v1800, %v1796
  %v1802 = vlaneseq
  %v1803 = vshrl.u32 %v1802, 7
  %v1804 = vsub.s32 %v1192, %v1803
  %v1805 = vrot.slane %v905, %v1804
  %v1806 = vsel %vm1197, %v1805, %v1801
  %v1807 = vlaneseq
  %v1808 = vshrl.u32 %v1807, 7
  %v1809 = vsub.s32 %v1199, %v1808
  %v1810 = vrot.slane %v906, %v1809
  %v1811 = vsel %vm1204, %v1810, %v1806
  %v1812 = vlaneseq
  %v1813 = vshrl.u32 %v1812, 7
  %v1814 = vsub.s32 %v1206, %v1813
  %v1815 = vrot.slane %v907, %v1814
  %v1816 = vsel %vm1211, %v1815, %v1811
  %v1817 = vlaneseq
  %v1818 = vshrl.u32 %v1817, 7
  %v1819 = vsub.s32 %v1213, %v1818
  %v1820 = vrot.slane %v908, %v1819
  %v1821 = vsel %vm1218, %v1820, %v1816
  %v1822 = vlaneseq
  %v1823 = vshrl.u32 %v1822, 7
  %v1824 = vsub.s32 %v1220, %v1823
  %v1825 = vrot.slane %v909, %v1824
  %v1826 = vsel %vm1225, %v1825, %v1821
  %v1827 = vlaneseq
  %v1828 = vshrl.u32 %v1827, 7
  %v1829 = vsub.s32 %v1227, %v1828
  %v1830 = vrot.slane %v910, %v1829
  %v1831 = vsel %vm1232, %v1830, %v1826
  %v1832 = vlaneseq
  %v1833 = vshrl.u32 %v1832, 7
  %v1834 = vsub.s32 %v1234, %v1833
  %v1835 = vrot.slane %v911, %v1834
  %v1836 = vsel %vm1239, %v1835, %v1831
  %v1837 = vlaneseq
  %v1838 = vshrl.u32 %v1837, 7
  %v1839 = vsub.s32 %v1241, %v1838
  %v1840 = vrot.slane %v912, %v1839
  %v1841 = vsel %vm1246, %v1840, %v1836
  %v1842 = vlaneseq
  %v1843 = vshrl.u32 %v1842, 7
  %v1844 = vsub.s32 %v1248, %v1843
  %v1845 = vrot.slane %v913, %v1844
  %v1846 = vsel %vm1253, %v1845, %v1841
  %v1847 = vlaneseq
  %v1848 = vshrl.u32 %v1847, 7
  %v1849 = vsub.s32 %v1255, %v1848
  %v1850 = vrot.slane %v914, %v1849
  %v1851 = vsel %vm1260, %v1850, %v1846
  %v1852 = vlaneseq
  %v1853 = vshrl.u32 %v1852, 7
  %v1854 = vsub.s32 %v1180, %v1853
  %v1855 = vrot.slane %v915, %v1854
  %v1856 = vlaneseq
  %v1857 = vshrl.u32 %v1856, 7
  %v1858 = vsub.s32 %v1185, %v1857
  %v1859 = vrot.slane %v916, %v1858
  %v1860 = vsel %vm1190, %v1859, %v1855
  %v1861 = vlaneseq
  %v1862 = vshrl.u32 %v1861, 7
  %v1863 = vsub.s32 %v1192, %v1862
  %v1864 = vrot.slane %v917, %v1863
  %v1865 = vsel %vm1197, %v1864, %v1860
  %v1866 = vlaneseq
  %v1867 = vshrl.u32 %v1866, 7
  %v1868 = vsub.s32 %v1199, %v1867
  %v1869 = vrot.slane %v918, %v1868
  %v1870 = vsel %vm1204, %v1869, %v1865
  %v1871 = vlaneseq
  %v1872 = vshrl.u32 %v1871, 7
  %v1873 = vsub.s32 %v1206, %v1872
  %v1874 = vrot.slane %v919, %v1873
  %v1875 = vsel %vm1211, %v1874, %v1870
  %v1876 = vlaneseq
  %v1877 = vshrl.u32 %v1876, 7
  %v1878 = vsub.s32 %v1213, %v1877
  %v1879 = vrot.slane %v920, %v1878
  %v1880 = vsel %vm1218, %v1879, %v1875
  %v1881 = vlaneseq
  %v1882 = vshrl.u32 %v1881, 7
  %v1883 = vsub.s32 %v1220, %v1882
  %v1884 = vrot.slane %v921, %v1883
  %v1885 = vsel %vm1225, %v1884, %v1880
  %v1886 = vlaneseq
  %v1887 = vshrl.u32 %v1886, 7
  %v1888 = vsub.s32 %v1227, %v1887
  %v1889 = vrot.slane %v922, %v1888
  %v1890 = vsel %vm1232, %v1889, %v1885
  %v1891 = vlaneseq
  %v1892 = vshrl.u32 %v1891, 7
  %v1893 = vsub.s32 %v1234, %v1892
  %v1894 = vrot.slane %v923, %v1893
  %v1895 = vsel %vm1239, %v1894, %v1890
  %v1896 = vlaneseq
  %v1897 = vshrl.u32 %v1896, 7
  %v1898 = vsub.s32 %v1241, %v1897
  %v1899 = vrot.slane %v924, %v1898
  %v1900 = vsel %vm1246, %v1899, %v1895
  %v1901 = vlaneseq
  %v1902 = vshrl.u32 %v1901, 7
  %v1903 = vsub.s32 %v1248, %v1902
  %v1904 = vrot.slane %v925, %v1903
  %v1905 = vsel %vm1253, %v1904, %v1900
  %v1906 = vlaneseq
  %v1907 = vshrl.u32 %v1906, 7
  %v1908 = vsub.s32 %v1255, %v1907
  %v1909 = vrot.slane %v926, %v1908
  %v1910 = vsel %vm1260, %v1909, %v1905
  %v1911 = vlaneseq
  %v1912 = vshrl.u32 %v1911, 7
  %v1913 = vsub.s32 %v1180, %v1912
  %v1914 = vrot.slane %v927, %v1913
  %v1915 = vlaneseq
  %v1916 = vshrl.u32 %v1915, 7
  %v1917 = vsub.s32 %v1185, %v1916
  %v1918 = vrot.slane %v928, %v1917
  %v1919 = vsel %vm1190, %v1918, %v1914
  %v1920 = vlaneseq
  %v1921 = vshrl.u32 %v1920, 7
  %v1922 = vsub.s32 %v1192, %v1921
  %v1923 = vrot.slane %v929, %v1922
  %v1924 = vsel %vm1197, %v1923, %v1919
  %v1925 = vlaneseq
  %v1926 = vshrl.u32 %v1925, 7
  %v1927 = vsub.s32 %v1199, %v1926
  %v1928 = vrot.slane %v930, %v1927
  %v1929 = vsel %vm1204, %v1928, %v1924
  %v1930 = vlaneseq
  %v1931 = vshrl.u32 %v1930, 7
  %v1932 = vsub.s32 %v1206, %v1931
  %v1933 = vrot.slane %v931, %v1932
  %v1934 = vsel %vm1211, %v1933, %v1929
  %v1935 = vlaneseq
  %v1936 = vshrl.u32 %v1935, 7
  %v1937 = vsub.s32 %v1213, %v1936
  %v1938 = vrot.slane %v932, %v1937
  %v1939 = vsel %vm1218, %v1938, %v1934
  %v1940 = vlaneseq
  %v1941 = vshrl.u32 %v1940, 7
  %v1942 = vsub.s32 %v1220, %v1941
  %v1943 = vrot.slane %v933, %v1942
  %v1944 = vsel %vm1225, %v1943, %v1939
  %v1945 = vlaneseq
  %v1946 = vshrl.u32 %v1945, 7
  %v1947 = vsub.s32 %v1227, %v1946
  %v1948 = vrot.slane %v934, %v1947
  %v1949 = vsel %vm1232, %v1948, %v1944
  %v1950 = vlaneseq
  %v1951 = vshrl.u32 %v1950, 7
  %v1952 = vsub.s32 %v1234, %v1951
  %v1953 = vrot.slane %v935, %v1952
  %v1954 = vsel %vm1239, %v1953, %v1949
  %v1955 = vlaneseq
  %v1956 = vshrl.u32 %v1955, 7
  %v1957 = vsub.s32 %v1241, %v1956
  %v1958 = vrot.slane %v936, %v1957
  %v1959 = vsel %vm1246, %v1958, %v1954
  %v1960 = vlaneseq
  %v1961 = vshrl.u32 %v1960, 7
  %v1962 = vsub.s32 %v1248, %v1961
  %v1963 = vrot.slane %v937, %v1962
  %v1964 = vsel %vm1253, %v1963, %v1959
  %v1965 = vlaneseq
  %v1966 = vshrl.u32 %v1965, 7
  %v1967 = vsub.s32 %v1255, %v1966
  %v1968 = vrot.slane %v938, %v1967
  %v1969 = vsel %vm1260, %v1968, %v1964
  %v1970 = vlaneseq
  %v1971 = vshrl.u32 %v1970, 7
  %v1972 = vsub.s32 %v1180, %v1971
  %v1973 = vrot.slane %v939, %v1972
  %v1974 = vlaneseq
  %v1975 = vshrl.u32 %v1974, 7
  %v1976 = vsub.s32 %v1185, %v1975
  %v1977 = vrot.slane %v940, %v1976
  %v1978 = vsel %vm1190, %v1977, %v1973
  %v1979 = vlaneseq
  %v1980 = vshrl.u32 %v1979, 7
  %v1981 = vsub.s32 %v1192, %v1980
  %v1982 = vrot.slane %v941, %v1981
  %v1983 = vsel %vm1197, %v1982, %v1978
  %v1984 = vlaneseq
  %v1985 = vshrl.u32 %v1984, 7
  %v1986 = vsub.s32 %v1199, %v1985
  %v1987 = vrot.slane %v942, %v1986
  %v1988 = vsel %vm1204, %v1987, %v1983
  %v1989 = vlaneseq
  %v1990 = vshrl.u32 %v1989, 7
  %v1991 = vsub.s32 %v1206, %v1990
  %v1992 = vrot.slane %v943, %v1991
  %v1993 = vsel %vm1211, %v1992, %v1988
  %v1994 = vlaneseq
  %v1995 = vshrl.u32 %v1994, 7
  %v1996 = vsub.s32 %v1213, %v1995
  %v1997 = vrot.slane %v944, %v1996
  %v1998 = vsel %vm1218, %v1997, %v1993
  %v1999 = vlaneseq
  %v2000 = vshrl.u32 %v1999, 7
  %v2001 = vsub.s32 %v1220, %v2000
  %v2002 = vrot.slane %v945, %v2001
  %v2003 = vsel %vm1225, %v2002, %v1998
  %v2004 = vlaneseq
  %v2005 = vshrl.u32 %v2004, 7
  %v2006 = vsub.s32 %v1227, %v2005
  %v2007 = vrot.slane %v946, %v2006
  %v2008 = vsel %vm1232, %v2007, %v2003
  %v2009 = vlaneseq
  %v2010 = vshrl.u32 %v2009, 7
  %v2011 = vsub.s32 %v1234, %v2010
  %v2012 = vrot.slane %v947, %v2011
  %v2013 = vsel %vm1239, %v2012, %v2008
  %v2014 = vlaneseq
  %v2015 = vshrl.u32 %v2014, 7
  %v2016 = vsub.s32 %v1241, %v2015
  %v2017 = vrot.slane %v948, %v2016
  %v2018 = vsel %vm1246, %v2017, %v2013
  %v2019 = vlaneseq
  %v2020 = vshrl.u32 %v2019, 7
  %v2021 = vsub.s32 %v1248, %v2020
  %v2022 = vrot.slane %v949, %v2021
  %v2023 = vsel %vm1253, %v2022, %v2018
  %v2024 = vlaneseq
  %v2025 = vshrl.u32 %v2024, 7
  %v2026 = vsub.s32 %v1255, %v2025
  %v2027 = vrot.slane %v950, %v2026
  %v2028 = vsel %vm1260, %v2027, %v2023
  %v2029 = vlaneseq
  %v2030 = vshrl.u32 %v2029, 7
  %v2031 = vsub.s32 %v1180, %v2030
  %v2032 = vrot.slane %v951, %v2031
  %v2033 = vlaneseq
  %v2034 = vshrl.u32 %v2033, 7
  %v2035 = vsub.s32 %v1185, %v2034
  %v2036 = vrot.slane %v952, %v2035
  %v2037 = vsel %vm1190, %v2036, %v2032
  %v2038 = vlaneseq
  %v2039 = vshrl.u32 %v2038, 7
  %v2040 = vsub.s32 %v1192, %v2039
  %v2041 = vrot.slane %v953, %v2040
  %v2042 = vsel %vm1197, %v2041, %v2037
  %v2043 = vlaneseq
  %v2044 = vshrl.u32 %v2043, 7
  %v2045 = vsub.s32 %v1199, %v2044
  %v2046 = vrot.slane %v954, %v2045
  %v2047 = vsel %vm1204, %v2046, %v2042
  %v2048 = vlaneseq
  %v2049 = vshrl.u32 %v2048, 7
  %v2050 = vsub.s32 %v1206, %v2049
  %v2051 = vrot.slane %v955, %v2050
  %v2052 = vsel %vm1211, %v2051, %v2047
  %v2053 = vlaneseq
  %v2054 = vshrl.u32 %v2053, 7
  %v2055 = vsub.s32 %v1213, %v2054
  %v2056 = vrot.slane %v956, %v2055
  %v2057 = vsel %vm1218, %v2056, %v2052
  %v2058 = vlaneseq
  %v2059 = vshrl.u32 %v2058, 7
  %v2060 = vsub.s32 %v1220, %v2059
  %v2061 = vrot.slane %v957, %v2060
  %v2062 = vsel %vm1225, %v2061, %v2057
  %v2063 = vlaneseq
  %v2064 = vshrl.u32 %v2063, 7
  %v2065 = vsub.s32 %v1227, %v2064
  %v2066 = vrot.slane %v958, %v2065
  %v2067 = vsel %vm1232, %v2066, %v2062
  %v2068 = vlaneseq
  %v2069 = vshrl.u32 %v2068, 7
  %v2070 = vsub.s32 %v1234, %v2069
  %v2071 = vrot.slane %v959, %v2070
  %v2072 = vsel %vm1239, %v2071, %v2067
  %v2073 = vlaneseq
  %v2074 = vshrl.u32 %v2073, 7
  %v2075 = vsub.s32 %v1241, %v2074
  %v2076 = vrot.slane %v960, %v2075
  %v2077 = vsel %vm1246, %v2076, %v2072
  %v2078 = vlaneseq
  %v2079 = vshrl.u32 %v2078, 7
  %v2080 = vsub.s32 %v1248, %v2079
  %v2081 = vrot.slane %v961, %v2080
  %v2082 = vsel %vm1253, %v2081, %v2077
  %v2083 = vlaneseq
  %v2084 = vshrl.u32 %v2083, 7
  %v2085 = vsub.s32 %v1255, %v2084
  %v2086 = vrot.slane %v962, %v2085
  %v2087 = vsel %vm1260, %v2086, %v2082
  %v2088 = vlaneseq
  %v2089 = vshrl.u32 %v2088, 7
  %v2090 = vsub.s32 %v1180, %v2089
  %v2091 = vrot.slane %v963, %v2090
  %v2092 = vlaneseq
  %v2093 = vshrl.u32 %v2092, 7
  %v2094 = vsub.s32 %v1185, %v2093
  %v2095 = vrot.slane %v964, %v2094
  %v2096 = vsel %vm1190, %v2095, %v2091
  %v2097 = vlaneseq
  %v2098 = vshrl.u32 %v2097, 7
  %v2099 = vsub.s32 %v1192, %v2098
  %v2100 = vrot.slane %v965, %v2099
  %v2101 = vsel %vm1197, %v2100, %v2096
  %v2102 = vlaneseq
  %v2103 = vshrl.u32 %v2102, 7
  %v2104 = vsub.s32 %v1199, %v2103
  %v2105 = vrot.slane %v966, %v2104
  %v2106 = vsel %vm1204, %v2105, %v2101
  %v2107 = vlaneseq
  %v2108 = vshrl.u32 %v2107, 7
  %v2109 = vsub.s32 %v1206, %v2108
  %v2110 = vrot.slane %v967, %v2109
  %v2111 = vsel %vm1211, %v2110, %v2106
  %v2112 = vlaneseq
  %v2113 = vshrl.u32 %v2112, 7
  %v2114 = vsub.s32 %v1213, %v2113
  %v2115 = vrot.slane %v968, %v2114
  %v2116 = vsel %vm1218, %v2115, %v2111
  %v2117 = vlaneseq
  %v2118 = vshrl.u32 %v2117, 7
  %v2119 = vsub.s32 %v1220, %v2118
  %v2120 = vrot.slane %v969, %v2119
  %v2121 = vsel %vm1225, %v2120, %v2116
  %v2122 = vlaneseq
  %v2123 = vshrl.u32 %v2122, 7
  %v2124 = vsub.s32 %v1227, %v2123
  %v2125 = vrot.slane %v970, %v2124
  %v2126 = vsel %vm1232, %v2125, %v2121
  %v2127 = vlaneseq
  %v2128 = vshrl.u32 %v2127, 7
  %v2129 = vsub.s32 %v1234, %v2128
  %v2130 = vrot.slane %v971, %v2129
  %v2131 = vsel %vm1239, %v2130, %v2126
  %v2132 = vlaneseq
  %v2133 = vshrl.u32 %v2132, 7
  %v2134 = vsub.s32 %v1241, %v2133
  %v2135 = vrot.slane %v972, %v2134
  %v2136 = vsel %vm1246, %v2135, %v2131
  %v2137 = vlaneseq
  %v2138 = vshrl.u32 %v2137, 7
  %v2139 = vsub.s32 %v1248, %v2138
  %v2140 = vrot.slane %v973, %v2139
  %v2141 = vsel %vm1253, %v2140, %v2136
  %v2142 = vlaneseq
  %v2143 = vshrl.u32 %v2142, 7
  %v2144 = vsub.s32 %v1255, %v2143
  %v2145 = vrot.slane %v974, %v2144
  %v2146 = vsel %vm1260, %v2145, %v2141
  %vm2147 = vcmask 1041409
  %v2148 = vsel %vm2147, %v1320, %v1261
  %vm2149 = vcmask 1042434
  %v2150 = vsel %vm2149, %v1379, %v2148
  %vm2151 = vcmask 1043459
  %v2152 = vsel %vm2151, %v1438, %v2150
  %vm2153 = vcmask 1044484
  %v2154 = vsel %vm2153, %v1497, %v2152
  %vm2155 = vcmask 1045509
  %v2156 = vsel %vm2155, %v1556, %v2154
  %vm2157 = vcmask 1046534
  %v2158 = vsel %vm2157, %v1615, %v2156
  %vm2159 = vcmask 1047559
  %v2160 = vsel %vm2159, %v1674, %v2158
  %v2161 = vsel %vm2147, %v1792, %v1733
  %v2162 = vsel %vm2149, %v1851, %v2161
  %v2163 = vsel %vm2151, %v1910, %v2162
  %v2164 = vsel %vm2153, %v1969, %v2163
  %v2165 = vsel %vm2155, %v2028, %v2164
  %v2166 = vsel %vm2157, %v2087, %v2165
  %v2167 = vsel %vm2159, %v2146, %v2166
  %vm2168 = vcmask 785408
  %v2169 = vsel %vm2168, %v2160, 0
  %v2171 = vsel %vm2168, %v2167, 0
  %2173 = vmatprep.subr.mxu0 0.0
  %2174 = vmatpush1.msra.mxu0 %v975
  %2175 = vmatprep.subr.mxu0 0.0
  %2176 = vmatpush1.msra.mxu0 %v976
  %2177 = vmatprep.subr.mxu0 0.0
  %2178 = vmatpush1.msra.mxu0 %v977
  %2179 = vmatprep.subr.mxu0 0.0
  %2180 = vmatpush1.msra.mxu0 %v978
  %2181 = vmatprep.subr.mxu0 0.0
  %2182 = vmatpush1.msra.mxu0 %v979
  %2183 = vmatprep.subr.mxu0 0.0
  %2184 = vmatpush1.msra.mxu0 %v980
  %2185 = vmatprep.subr.mxu0 0.0
  %2186 = vmatpush1.msra.mxu0 %v981
  %2187 = vmatprep.subr.mxu0 0.0
  %2188 = vmatpush1.msra.mxu0 %v982
  %2189 = vmatprep.subr.mxu0 0.0
  %2190 = vmatpush1.msra.mxu0 %v983
  %2191 = vmatprep.subr.mxu0 0.0
  %2192 = vmatpush1.msra.mxu0 %v984
  %2193 = vmatprep.subr.mxu0 0.0
  %2194 = vmatpush1.msra.mxu0 %v985
  %2195 = vmatprep.subr.mxu0 0.0
  %2196 = vmatpush1.msra.mxu0 %v986
  %2197 = vmatprep.subr.mxu0 0.0
  %2198 = vmatpush1.msra.mxu0 0.0
  %2199 = vmatprep.subr.mxu0 0.0
  %2200 = vmatpush1.msra.mxu0 0.0
  %2201 = vmatprep.subr.mxu0 0.0
  %2202 = vmatpush1.msra.mxu0 0.0
  %2203 = vmatprep.subr.mxu0 0.0
  %2204 = vmatpush1.msra.mxu0 0.0
  %2205 = vmatprep.subr.mxu0 0.0
  %2206 = vmatpush1.msra.mxu0 0.0
  %2207 = vmatprep.subr.mxu0 0.0
  %2208 = vmatpush1.msra.mxu0 0.0
  %2209 = vmatprep.subr.mxu0 0.0
  %2210 = vmatpush1.msra.mxu0 0.0
  %2211 = vmatprep.subr.mxu0 0.0
  %2212 = vmatpush1.msra.mxu0 0.0
  %2213 = vmatprep.subr.mxu0 0.0
  %2214 = vmatpush1.msra.mxu0 0.0
  %2215 = vmatprep.subr.mxu0 0.0
  %2216 = vmatpush1.msra.mxu0 0.0
  %2217 = vmatprep.subr.mxu0 0.0
  %2218 = vmatpush1.msra.mxu0 0.0
  %2219 = vmatprep.subr.mxu0 0.0
  %2220 = vmatpush1.msra.mxu0 0.0
  %2221 = vmatprep.subr.mxu0 0.0
  %2222 = vmatpush1.msra.mxu0 0.0
  %2223 = vmatprep.subr.mxu0 0.0
  %2224 = vmatpush1.msra.mxu0 0.0
  %2225 = vmatprep.subr.mxu0 0.0
  %2226 = vmatpush1.msra.mxu0 0.0
  %2227 = vmatprep.subr.mxu0 0.0
  %2228 = vmatpush1.msra.mxu0 0.0
  %2229 = vmatprep.subr.mxu0 0.0
  %2230 = vmatpush1.msra.mxu0 0.0
  %2231 = vmatprep.subr.mxu0 0.0
  %2232 = vmatpush1.msra.mxu0 0.0
  %2233 = vmatprep.subr.mxu0 0.0
  %2234 = vmatpush1.msra.mxu0 0.0
  %2235 = vmatprep.subr.mxu0 0.0
  %2236 = vmatpush1.msra.mxu0 0.0
  %2237 = vmatprep.mubr.f32.mxu0 0.0
  %2238 = vmatmul.mubr.f32.gmra.mrb[0].mxu0 %v2169
  %v2239 = vpop.f32.mrb[0].mxu0
  %v2240 = vadd.f32 0.0, %v2239
  %v2241 = vpop.f32.mrb[0].mxu0
  %2242 = vmatprep.mubr.f32.mxu0 0.0
  %2243 = vmatmul.mubr.f32.gmra.mrb[0].mxu0 %v2171
  %v2244 = vpop.f32.mrb[0].mxu0
  %v2245 = vadd.f32 0.0, %v2244
  %v2246 = vpop.f32.mrb[0].mxu0
  %2247 = vdwg.mxu0
  %2248 = vst [vmem:[%s2] sm:$0xff] %v2240
  %2249 = vst [vmem:[%s2 + $0x8] sm:$0xff] %v2245
  %s2250 = smul.u32 0, 16
  %v2251 = vlaneseq
  %v2252 = vshrl.u32 %v2251, 7
  %v2253 = vadd.s32 %v2252, 8
  %v2254 = vstv %s2250
  %v2255 = vadd.s32 %v2254, %v2252
  %v2256 = vadd.s32 %v2254, %v2253
  %vm2257 = vcmp.lt.s32.totalorder %v2255, 16
  %vm2258 = vcmp.lt.s32.totalorder %v2256, 16
  %v2259 = vsel %vm2257, 1, 0
  %v2260 = vsel %vm2258, 1, 0
  %vm2261 = vcmp.eq.s32.totalorder %v2259, 1
  %vm2262 = vcmp.eq.s32.totalorder %v2260, 1
  %v2263 = vsel %vm2261, %v2240, 0.0
  %v2264 = vsel %vm2262, %v2245, 0.0
  %v2265 = vadd.f32 %v2263, %v2264
  %v2266 = vrot.slane %v2265, 4
  %v2267 = vadd.f32 %v2265, %v2266
  %v2268 = vrot.slane %v2267, 2
  %v2269 = vadd.f32 %v2267, %v2268
  %v2270 = vrot.slane %v2269, 1
  %v2271 = vadd.f32 %v2269, %v2270
  %2272 = vst [vmem:[%s3] sm:$0x1] %v2271
  %v2273 = vmul.f32 %v2263, %v2263
  %v2274 = vmul.f32 %v2264, %v2264
  %v2275 = vadd.f32 %v2273, %v2274
  %v2276 = vrot.slane %v2275, 4
  %v2277 = vadd.f32 %v2275, %v2276
  %v2278 = vrot.slane %v2277, 2
  %v2279 = vadd.f32 %v2277, %v2278
  %v2280 = vrot.slane %v2279, 1
  %v2281 = vadd.f32 %v2279, %v2280
  %2282 = vst [vmem:[%s4] sm:$0x1] %v2281
  // Predicated region
  $region10: #{margin_head_forward.3} parent=0 // pred_check
    _
  $region11: #{margin_head_forward.3} parent=0 // pred_check_branch
    %2284 = sbr.rel (0) target = $region13
  $region12: #{margin_head_forward.3} parent=0 // pred_region
    _
  $region13: #{margin_head_forward.3} parent=0 // pred_fallthru
    _
  // Predicated region
  $region14: #{margin_head_forward.3} parent=0 // pred_check
    _
  $region15: #{margin_head_forward.3} parent=0 // pred_check_branch
    %2286 = sbr.rel (0) target = $region17
  $region16: #{margin_head_forward.3} parent=0 // pred_region
    _
  $region17: #{margin_head_forward.3} parent=0 // pred_fallthru
    _
  // Predicated region
  $region18: #{margin_head_forward.3} parent=0 // pred_check
    _
  $region19: #{margin_head_forward.3} parent=0 // pred_check_branch
    %2288 = sbr.rel (0) target = $region21
  $region20: #{margin_head_forward.3} parent=0 // pred_region
    _
  $region21: #{margin_head_forward.3} parent=0 // pred_fallthru
    _
  // Predicated region
  $region22: #{margin_head_forward.3} parent=0 // pred_check
    _
  $region23: #{margin_head_forward.3} parent=0 // pred_check_branch
    %2290 = sbr.rel (0) target = $region25
  $region24: #{margin_head_forward.3} parent=0 // pred_region
    _
  $region25: #{margin_head_forward.3} parent=0 // pred_fallthru
    _
  // Predicated region
  $region26: #{margin_head_forward.3} parent=0 // pred_check
    _
  $region27: #{margin_head_forward.3} parent=0 // pred_check_branch
    %2292 = sbr.rel (0) target = $region29
  $region28: #{margin_head_forward.3} parent=0 // pred_region
    _
  $region29: #{margin_head_forward.3} parent=0 // pred_fallthru
    _
  // Predicated region
  $region30: #{margin_head_forward.3} parent=0 // pred_check
    _
  $region31: #{margin_head_forward.3} parent=0 // pred_check_branch
    %2294 = sbr.rel (0) target = $region33
  $region32: #{margin_head_forward.3} parent=0 // pred_region
    _
  $region33: #{margin_head_forward.3} parent=0 // pred_fallthru
    _

</llo_original>
